<compile_context>
chip_gen: v7x
topology: tpu7x:2x2x1
jax: 0.10.0
libtpu: 0.0.40
codegen_flags: <defaults>
</compile_context>

<pallas_src>
import jax
import jax.numpy as jnp
from jax import lax
from jax.experimental import pallas as pl
from jax.experimental.pallas import tpu as pltpu


def lstm1_kernel(x_ref,      # (Tc*Bp, I)   time-chunk of flattened time-major input
                 wih_ref,    # (I, 4G)      W_ih^T, gate k in lanes [k*G, k*G+H)
                 whh_ref,    # (G, 4G)      W_hh^T, rows >= H are zero
                 b_ref,      # (1, 4G)      bias_ih + bias_hh, lane-padded
                 w1_ref,     # (G, 128)     fc_1.weight^T, rows >= H are zero
                 b1_ref,     # (1, 128)     fc_1.bias
                 w2_ref,     # (128, 128)   fc.weight^T, cols >= C are zero
                 b2_ref,     # (1, 128)     fc.bias, lane-padded
                 out_ref,    # (Bp, 128)    lane-padded output
                 h_ref,      # (Bp, G)      VMEM scratch: hidden state carry
                 c_ref):     # (Bp, G)      VMEM scratch: cell state carry
    t_chunk = pl.program_id(0)
    n_chunks = pl.num_programs(0)

    @pl.when(t_chunk == 0)
    def _init():
        h_ref[...] = jnp.zeros_like(h_ref)
        c_ref[...] = jnp.zeros_like(c_ref)

    Bp, G = h_ref.shape
    Tc = x_ref.shape[0] // Bp

    whh = whh_ref[...]

    # Hoisted input projection for this chunk: one matmul with M = Tc*Bp rows,
    # bias folded in (no per-step broadcast/add on the recurrent path).
    xg = (jnp.dot(x_ref[...], wih_ref[...], preferred_element_type=jnp.float32)
          + b_ref[...])                                    # (Tc*Bp, 4G)

    h = h_ref[...]
    c = c_ref[...]

    # Statically unrolled recurrence over the chunk (Tc is small and static).
    for s in range(Tc):
        xg_t = xg[s * Bp:(s + 1) * Bp, :]                  # static, sublane-aligned view
        gates = xg_t + jnp.dot(h, whh, preferred_element_type=jnp.float32)
        # 128-lane-aligned gate blocks, PyTorch gate order [i, f, g, o].
        i_g = jax.nn.sigmoid(gates[:, 0 * G:1 * G])
        f_g = jax.nn.sigmoid(gates[:, 1 * G:2 * G])
        g_g = jnp.tanh(gates[:, 2 * G:3 * G])
        o_g = jax.nn.sigmoid(gates[:, 3 * G:4 * G])
        c = f_g * c + i_g * g_g
        h = o_g * jnp.tanh(c)

    h_ref[...] = h
    c_ref[...] = c

    # Epilogue (hn -> relu -> fc_1 -> relu -> fc) only on the last chunk.
    @pl.when(t_chunk == n_chunks - 1)
    def _epilogue():
        hn = jnp.maximum(h, 0.0)
        z1 = jnp.dot(hn, w1_ref[...], preferred_element_type=jnp.float32) + b1_ref[...]
        z1 = jnp.maximum(z1, 0.0)
        out_ref[...] = (jnp.dot(z1, w2_ref[...], preferred_element_type=jnp.float32)
                        + b2_ref[...])


def lstm1_forward(x, params, *, time_chunk=None):
    """x: (B, T, I) float32 (batch_first, like PyTorch). Returns (B, num_classes)."""
    B, T, I = x.shape
    w_ih, w_hh, b_ih, b_hh, w1, b1, w2, b2 = params
    H = w_hh.shape[1]
    C = w2.shape[0]

    G = 128                    # lane-aligned width per gate / padded hidden
    N1 = w1.shape[0]           # 128 (fc_1 out features)
    C_pad = 128                # lane-dense output width
    Bp = ((B + 7) // 8) * 8    # sublane-padded batch

    if time_chunk is None:
        time_chunk = T
    assert T % time_chunk == 0
    n_chunks = T // time_chunk

    # Time-major, batch-padded, flattened to (T*Bp, I) so each chunk is one
    # rectangular (time_chunk*Bp, I) tile streamed by the BlockSpec pipeline.
    x_tm = jnp.transpose(x, (1, 0, 2))                           # (T, B, I)
    x_tm = jnp.pad(x_tm, ((0, 0), (0, Bp - B), (0, 0)))          # (T, Bp, I)
    x2d = x_tm.reshape(T * Bp, I).astype(jnp.float32)

    def pad_gates(w_t):
        # (rows, 4H) -> (rows, 4G): gate k moved to lanes [k*G, k*G+H), rest zero.
        rows = w_t.shape[0]
        out = jnp.zeros((rows, 4 * G), jnp.float32)
        for k in range(4):
            out = out.at[:, k * G:k * G + H].set(w_t[:, k * H:(k + 1) * H])
        return out

    wih_p = pad_gates(jnp.transpose(w_ih))                                   # (I, 4G)
    whh_p = jnp.zeros((G, 4 * G), jnp.float32).at[:H, :].set(
        pad_gates(jnp.transpose(w_hh)))                                      # (G, 4G)
    b_p = pad_gates((b_ih + b_hh).reshape(1, 4 * H))                         # (1, 4G)

    w1_p = jnp.zeros((G, N1), jnp.float32).at[:H, :].set(jnp.transpose(w1))  # (G, 128)
    b1_r = b1.reshape(1, N1).astype(jnp.float32)                             # (1, 128)
    w2_p = jnp.zeros((N1, C_pad), jnp.float32).at[:, :C].set(jnp.transpose(w2))
    b2_p = jnp.zeros((1, C_pad), jnp.float32).at[:, :C].set(b2)

    def full_spec(shape):
        return pl.BlockSpec(shape, lambda t: (0,) * len(shape))

    out = pl.pallas_call(
        lstm1_kernel,
        out_shape=jax.ShapeDtypeStruct((Bp, C_pad), jnp.float32),
        grid=(n_chunks,),
        in_specs=[
            pl.BlockSpec((time_chunk * Bp, I), lambda t: (t, 0)),  # streamed x chunk
            full_spec((I, 4 * G)),
            full_spec((G, 4 * G)),
            full_spec((1, 4 * G)),
            full_spec((G, N1)),
            full_spec((1, N1)),
            full_spec((N1, C_pad)),
            full_spec((1, C_pad)),
        ],
        out_specs=pl.BlockSpec((Bp, C_pad), lambda t: (0, 0)),
        scratch_shapes=[pltpu.VMEM((Bp, G), jnp.float32),   # h carry
                        pltpu.VMEM((Bp, G), jnp.float32)],  # c carry
        compiler_params=pltpu.CompilerParams(
            dimension_semantics=("arbitrary",)),             # serial recurrence axis
    )(x2d, wih_p, whh_p, b_p, w1_p, b1_r, w2_p, b2_p)

    return out[:B, :C]


def lstm1_reference(x, params):
    """Pure-JAX reference identical to the PyTorch forward semantics."""
    w_ih, w_hh, b_ih, b_hh, w1, b1, w2, b2 = params
    B, T, I = x.shape
    H = w_hh.shape[1]
    h = jnp.zeros((B, H), jnp.float32)
    c = jnp.zeros((B, H), jnp.float32)
    for t in range(T):
        gates = x[:, t, :] @ w_ih.T + b_ih + h @ w_hh.T + b_hh
        i_g = jax.nn.sigmoid(gates[:, 0 * H:1 * H])
        f_g = jax.nn.sigmoid(gates[:, 1 * H:2 * H])
        g_g = jnp.tanh(gates[:, 2 * H:3 * H])
        o_g = jax.nn.sigmoid(gates[:, 3 * H:4 * H])
        c = f_g * c + i_g * g_g
        h = o_g * jnp.tanh(c)
    out = jnp.maximum(h, 0.0)
    out = jnp.maximum(out @ w1.T + b1, 0.0)
    return out @ w2.T + b2


def init_params(key, input_size, hidden_size, num_classes):
    ks = jax.random.split(key, 8)
    s = 1.0 / jnp.sqrt(hidden_size)
    w_ih = jax.random.uniform(ks[0], (4 * hidden_size, input_size), jnp.float32, -s, s)
    w_hh = jax.random.uniform(ks[1], (4 * hidden_size, hidden_size), jnp.float32, -s, s)
    b_ih = jax.random.uniform(ks[2], (4 * hidden_size,), jnp.float32, -s, s)
    b_hh = jax.random.uniform(ks[3], (4 * hidden_size,), jnp.float32, -s, s)
    s1 = 1.0 / jnp.sqrt(hidden_size)
    w1 = jax.random.uniform(ks[4], (128, hidden_size), jnp.float32, -s1, s1)
    b1 = jax.random.uniform(ks[5], (128,), jnp.float32, -s1, s1)
    s2 = 1.0 / jnp.sqrt(128.0)
    w2 = jax.random.uniform(ks[6], (num_classes, 128), jnp.float32, -s2, s2)
    b2 = jax.random.uniform(ks[7], (num_classes,), jnp.float32, -s2, s2)
    return (w_ih, w_hh, b_ih, b_hh, w1, b1, w2, b2)


if __name__ == "__main__":
    # Module hyper-params from nn_lstm.py
    hidden_size = 2
    input_size = 4
    num_classes = 1
    batch = 2
    seq_len = 8

    key = jax.random.PRNGKey(0)
    k_x, k_p = jax.random.split(key)
    x = jax.random.normal(k_x, (batch, seq_len, input_size), jnp.float32)
    params = init_params(k_p, input_size, hidden_size, num_classes)

    # time_chunk=4 -> grid=(2,) exercises the chunked-time pipeline + h/c carry.
    out = jax.block_until_ready(lstm1_forward(x, params, time_chunk=4))
    ref = jax.block_until_ready(lstm1_reference(x, params))

    assert out.shape == (batch, num_classes)
    assert jnp.allclose(out, ref, rtol=2e-3, atol=2e-3), (out, ref)
    print("KERNEL_OK")
</pallas_src>

<mosaic_0001>
module attributes {stable_mosaic.version = 11 : i64} {
  func.func @lstm1_kernel(%arg0: i32, %arg1: memref<32x4xf32, #tpu.memory_space<vmem>>, %arg2: memref<4x512xf32, #tpu.memory_space<vmem>>, %arg3: memref<128x512xf32, #tpu.memory_space<vmem>>, %arg4: memref<1x512xf32, #tpu.memory_space<vmem>>, %arg5: memref<128x128xf32, #tpu.memory_space<vmem>>, %arg6: memref<1x128xf32, #tpu.memory_space<vmem>>, %arg7: memref<128x128xf32, #tpu.memory_space<vmem>>, %arg8: memref<1x128xf32, #tpu.memory_space<vmem>>, %arg9: memref<8x128xf32, #tpu.memory_space<vmem>>, %arg10: memref<8x128xf32, #tpu.memory_space<vmem>>, %arg11: memref<8x128xf32, #tpu.memory_space<vmem>>) attributes {dimension_semantics = [#tpu.dimension_semantics<arbitrary>], iteration_bounds = array<i64: 2>, scalar_prefetch = 0 : i64, scratch_operands = 2 : i64, tpu.core_type = #tpu.core_type<tc>, window_params = [{transform_indices = @transform_0, window_bounds = array<i64: 32, 4>}, {pipeline_mode = #tpu.pipeline_mode<synchronous>, transform_indices = @transform_1, window_bounds = array<i64: 4, 512>}, {pipeline_mode = #tpu.pipeline_mode<synchronous>, transform_indices = @transform_2, window_bounds = array<i64: 128, 512>}, {pipeline_mode = #tpu.pipeline_mode<synchronous>, transform_indices = @transform_3, window_bounds = array<i64: 1, 512>}, {pipeline_mode = #tpu.pipeline_mode<synchronous>, transform_indices = @transform_4, window_bounds = array<i64: 128, 128>}, {pipeline_mode = #tpu.pipeline_mode<synchronous>, transform_indices = @transform_5, window_bounds = array<i64: 1, 128>}, {pipeline_mode = #tpu.pipeline_mode<synchronous>, transform_indices = @transform_6, window_bounds = array<i64: 128, 128>}, {pipeline_mode = #tpu.pipeline_mode<synchronous>, transform_indices = @transform_7, window_bounds = array<i64: 1, 128>}, {pipeline_mode = #tpu.pipeline_mode<synchronous>, transform_indices = @transform_8, window_bounds = array<i64: 8, 128>}]} {
    %c0_i32 = arith.constant 0 : i32
    %0 = arith.cmpi eq, %arg0, %c0_i32 : i32
    %1 = arith.extui %0 : i1 to i32
    %c0_i32_0 = arith.constant 0 : i32
    %2 = arith.cmpi ne, %1, %c0_i32_0 : i32
    scf.if %2 {
      %cst_33 = arith.constant 0.000000e+00 : f32
      %129 = vector.broadcast %cst_33 : f32 to vector<8x128xf32>
      %c0_34 = arith.constant 0 : index
      %c0_35 = arith.constant 0 : index
      %130 = vector.load %arg10[%c0_34, %c0_35] : memref<8x128xf32, #tpu.memory_space<vmem>>, vector<8x128xf32>
      tpu.vector_store %arg10[%c0_34, %c0_35], %129 {strides = array<i32>} : memref<8x128xf32, #tpu.memory_space<vmem>>, vector<8x128xf32>,
      %cst_36 = arith.constant 0.000000e+00 : f32
      %131 = vector.broadcast %cst_36 : f32 to vector<8x128xf32>
      %c0_37 = arith.constant 0 : index
      %c0_38 = arith.constant 0 : index
      %132 = vector.load %arg11[%c0_37, %c0_38] : memref<8x128xf32, #tpu.memory_space<vmem>>, vector<8x128xf32>
      tpu.vector_store %arg11[%c0_37, %c0_38], %131 {strides = array<i32>} : memref<8x128xf32, #tpu.memory_space<vmem>>, vector<8x128xf32>,
    } else {
    }
    %c0 = arith.constant 0 : index
    %c0_1 = arith.constant 0 : index
    %3 = vector.load %arg3[%c0, %c0_1] : memref<128x512xf32, #tpu.memory_space<vmem>>, vector<128x512xf32>
    %c0_2 = arith.constant 0 : index
    %c0_3 = arith.constant 0 : index
    %4 = vector.load %arg1[%c0_2, %c0_3] : memref<32x4xf32, #tpu.memory_space<vmem>>, vector<32x4xf32>
    %c0_4 = arith.constant 0 : index
    %c0_5 = arith.constant 0 : index
    %5 = vector.load %arg2[%c0_4, %c0_5] : memref<4x512xf32, #tpu.memory_space<vmem>>, vector<4x512xf32>
    %cst = arith.constant dense<0.000000e+00> : vector<32x512xf32>
    %6 = tpu.matmul %4, %5, %cst {dimension_numbers = #tpu.dot_dimension_numbers<[1], [0], [0], [1], [0, 0, 1, 1], [], []>} : vector<32x4xf32>, vector<4x512xf32>, vector<32x512xf32> -> vector<32x512xf32>
    %c0_6 = arith.constant 0 : index
    %c0_7 = arith.constant 0 : index
    %7 = vector.load %arg4[%c0_6, %c0_7] : memref<1x512xf32, #tpu.memory_space<vmem>>, vector<1x512xf32>
    %8 = vector.broadcast %7 : vector<1x512xf32> to vector<32x512xf32>
    %9 = arith.addf %6, %8 : vector<32x512xf32>
    %c0_8 = arith.constant 0 : index
    %c0_9 = arith.constant 0 : index
    %10 = vector.load %arg10[%c0_8, %c0_9] : memref<8x128xf32, #tpu.memory_space<vmem>>, vector<8x128xf32>
    %c0_10 = arith.constant 0 : index
    %c0_11 = arith.constant 0 : index
    %11 = vector.load %arg11[%c0_10, %c0_11] : memref<8x128xf32, #tpu.memory_space<vmem>>, vector<8x128xf32>
    %12 = vector.extract_strided_slice %9 {offsets = [0, 0], sizes = [8, 512], strides = [1, 1]} : vector<32x512xf32> to vector<8x512xf32>
    %cst_12 = arith.constant dense<0.000000e+00> : vector<8x512xf32>
    %13 = tpu.matmul %10, %3, %cst_12 {dimension_numbers = #tpu.dot_dimension_numbers<[1], [0], [0], [1], [0, 0, 1, 1], [], []>} : vector<8x128xf32>, vector<128x512xf32>, vector<8x512xf32> -> vector<8x512xf32>
    %14 = arith.addf %12, %13 : vector<8x512xf32>
    %15 = vector.extract_strided_slice %14 {offsets = [0, 0], sizes = [8, 128], strides = [1, 1]} : vector<8x512xf32> to vector<8x128xf32>
    %16 = arith.negf %15 : vector<8x128xf32>
    %17 = math.exp %16 : vector<8x128xf32>
    %cst_13 = arith.constant 1.000000e+00 : f32
    %18 = vector.broadcast %cst_13 : f32 to vector<8x128xf32>
    %19 = arith.addf %18, %17 : vector<8x128xf32>
    %20 = arith.divf %18, %19 : vector<8x128xf32>
    %21 = vector.extract_strided_slice %14 {offsets = [0, 128], sizes = [8, 128], strides = [1, 1]} : vector<8x512xf32> to vector<8x128xf32>
    %22 = arith.negf %21 : vector<8x128xf32>
    %23 = math.exp %22 : vector<8x128xf32>
    %cst_14 = arith.constant 1.000000e+00 : f32
    %24 = vector.broadcast %cst_14 : f32 to vector<8x128xf32>
    %25 = arith.addf %24, %23 : vector<8x128xf32>
    %26 = arith.divf %24, %25 : vector<8x128xf32>
    %27 = vector.extract_strided_slice %14 {offsets = [0, 256], sizes = [8, 128], strides = [1, 1]} : vector<8x512xf32> to vector<8x128xf32>
    %28 = math.tanh %27 : vector<8x128xf32>
    %29 = vector.extract_strided_slice %14 {offsets = [0, 384], sizes = [8, 128], strides = [1, 1]} : vector<8x512xf32> to vector<8x128xf32>
    %30 = arith.negf %29 : vector<8x128xf32>
    %31 = math.exp %30 : vector<8x128xf32>
    %cst_15 = arith.constant 1.000000e+00 : f32
    %32 = vector.broadcast %cst_15 : f32 to vector<8x128xf32>
    %33 = arith.addf %32, %31 : vector<8x128xf32>
    %34 = arith.divf %32, %33 : vector<8x128xf32>
    %35 = arith.mulf %26, %11 : vector<8x128xf32>
    %36 = arith.mulf %20, %28 : vector<8x128xf32>
    %37 = arith.addf %35, %36 : vector<8x128xf32>
    %38 = math.tanh %37 : vector<8x128xf32>
    %39 = arith.mulf %34, %38 : vector<8x128xf32>
    %40 = vector.extract_strided_slice %9 {offsets = [8, 0], sizes = [8, 512], strides = [1, 1]} : vector<32x512xf32> to vector<8x512xf32>
    %cst_16 = arith.constant dense<0.000000e+00> : vector<8x512xf32>
    %41 = tpu.matmul %39, %3, %cst_16 {dimension_numbers = #tpu.dot_dimension_numbers<[1], [0], [0], [1], [0, 0, 1, 1], [], []>} : vector<8x128xf32>, vector<128x512xf32>, vector<8x512xf32> -> vector<8x512xf32>
    %42 = arith.addf %40, %41 : vector<8x512xf32>
    %43 = vector.extract_strided_slice %42 {offsets = [0, 0], sizes = [8, 128], strides = [1, 1]} : vector<8x512xf32> to vector<8x128xf32>
    %44 = arith.negf %43 : vector<8x128xf32>
    %45 = math.exp %44 : vector<8x128xf32>
    %cst_17 = arith.constant 1.000000e+00 : f32
    %46 = vector.broadcast %cst_17 : f32 to vector<8x128xf32>
    %47 = arith.addf %46, %45 : vector<8x128xf32>
    %48 = arith.divf %46, %47 : vector<8x128xf32>
    %49 = vector.extract_strided_slice %42 {offsets = [0, 128], sizes = [8, 128], strides = [1, 1]} : vector<8x512xf32> to vector<8x128xf32>
    %50 = arith.negf %49 : vector<8x128xf32>
    %51 = math.exp %50 : vector<8x128xf32>
    %cst_18 = arith.constant 1.000000e+00 : f32
    %52 = vector.broadcast %cst_18 : f32 to vector<8x128xf32>
    %53 = arith.addf %52, %51 : vector<8x128xf32>
    %54 = arith.divf %52, %53 : vector<8x128xf32>
    %55 = vector.extract_strided_slice %42 {offsets = [0, 256], sizes = [8, 128], strides = [1, 1]} : vector<8x512xf32> to vector<8x128xf32>
    %56 = math.tanh %55 : vector<8x128xf32>
    %57 = vector.extract_strided_slice %42 {offsets = [0, 384], sizes = [8, 128], strides = [1, 1]} : vector<8x512xf32> to vector<8x128xf32>
    %58 = arith.negf %57 : vector<8x128xf32>
    %59 = math.exp %58 : vector<8x128xf32>
    %cst_19 = arith.constant 1.000000e+00 : f32
    %60 = vector.broadcast %cst_19 : f32 to vector<8x128xf32>
    %61 = arith.addf %60, %59 : vector<8x128xf32>
    %62 = arith.divf %60, %61 : vector<8x128xf32>
    %63 = arith.mulf %54, %37 : vector<8x128xf32>
    %64 = arith.mulf %48, %56 : vector<8x128xf32>
    %65 = arith.addf %63, %64 : vector<8x128xf32>
    %66 = math.tanh %65 : vector<8x128xf32>
    %67 = arith.mulf %62, %66 : vector<8x128xf32>
    %68 = vector.extract_strided_slice %9 {offsets = [16, 0], sizes = [8, 512], strides = [1, 1]} : vector<32x512xf32> to vector<8x512xf32>
    %cst_20 = arith.constant dense<0.000000e+00> : vector<8x512xf32>
    %69 = tpu.matmul %67, %3, %cst_20 {dimension_numbers = #tpu.dot_dimension_numbers<[1], [0], [0], [1], [0, 0, 1, 1], [], []>} : vector<8x128xf32>, vector<128x512xf32>, vector<8x512xf32> -> vector<8x512xf32>
    %70 = arith.addf %68, %69 : vector<8x512xf32>
    %71 = vector.extract_strided_slice %70 {offsets = [0, 0], sizes = [8, 128], strides = [1, 1]} : vector<8x512xf32> to vector<8x128xf32>
    %72 = arith.negf %71 : vector<8x128xf32>
    %73 = math.exp %72 : vector<8x128xf32>
    %cst_21 = arith.constant 1.000000e+00 : f32
    %74 = vector.broadcast %cst_21 : f32 to vector<8x128xf32>
    %75 = arith.addf %74, %73 : vector<8x128xf32>
    %76 = arith.divf %74, %75 : vector<8x128xf32>
    %77 = vector.extract_strided_slice %70 {offsets = [0, 128], sizes = [8, 128], strides = [1, 1]} : vector<8x512xf32> to vector<8x128xf32>
    %78 = arith.negf %77 : vector<8x128xf32>
    %79 = math.exp %78 : vector<8x128xf32>
    %cst_22 = arith.constant 1.000000e+00 : f32
    %80 = vector.broadcast %cst_22 : f32 to vector<8x128xf32>
    %81 = arith.addf %80, %79 : vector<8x128xf32>
    %82 = arith.divf %80, %81 : vector<8x128xf32>
    %83 = vector.extract_strided_slice %70 {offsets = [0, 256], sizes = [8, 128], strides = [1, 1]} : vector<8x512xf32> to vector<8x128xf32>
    %84 = math.tanh %83 : vector<8x128xf32>
    %85 = vector.extract_strided_slice %70 {offsets = [0, 384], sizes = [8, 128], strides = [1, 1]} : vector<8x512xf32> to vector<8x128xf32>
    %86 = arith.negf %85 : vector<8x128xf32>
    %87 = math.exp %86 : vector<8x128xf32>
    %cst_23 = arith.constant 1.000000e+00 : f32
    %88 = vector.broadcast %cst_23 : f32 to vector<8x128xf32>
    %89 = arith.addf %88, %87 : vector<8x128xf32>
    %90 = arith.divf %88, %89 : vector<8x128xf32>
    %91 = arith.mulf %82, %65 : vector<8x128xf32>
    %92 = arith.mulf %76, %84 : vector<8x128xf32>
    %93 = arith.addf %91, %92 : vector<8x128xf32>
    %94 = math.tanh %93 : vector<8x128xf32>
    %95 = arith.mulf %90, %94 : vector<8x128xf32>
    %96 = vector.extract_strided_slice %9 {offsets = [24, 0], sizes = [8, 512], strides = [1, 1]} : vector<32x512xf32> to vector<8x512xf32>
    %cst_24 = arith.constant dense<0.000000e+00> : vector<8x512xf32>
    %97 = tpu.matmul %95, %3, %cst_24 {dimension_numbers = #tpu.dot_dimension_numbers<[1], [0], [0], [1], [0, 0, 1, 1], [], []>} : vector<8x128xf32>, vector<128x512xf32>, vector<8x512xf32> -> vector<8x512xf32>
    %98 = arith.addf %96, %97 : vector<8x512xf32>
    %99 = vector.extract_strided_slice %98 {offsets = [0, 0], sizes = [8, 128], strides = [1, 1]} : vector<8x512xf32> to vector<8x128xf32>
    %100 = arith.negf %99 : vector<8x128xf32>
    %101 = math.exp %100 : vector<8x128xf32>
    %cst_25 = arith.constant 1.000000e+00 : f32
    %102 = vector.broadcast %cst_25 : f32 to vector<8x128xf32>
    %103 = arith.addf %102, %101 : vector<8x128xf32>
    %104 = arith.divf %102, %103 : vector<8x128xf32>
    %105 = vector.extract_strided_slice %98 {offsets = [0, 128], sizes = [8, 128], strides = [1, 1]} : vector<8x512xf32> to vector<8x128xf32>
    %106 = arith.negf %105 : vector<8x128xf32>
    %107 = math.exp %106 : vector<8x128xf32>
    %cst_26 = arith.constant 1.000000e+00 : f32
    %108 = vector.broadcast %cst_26 : f32 to vector<8x128xf32>
    %109 = arith.addf %108, %107 : vector<8x128xf32>
    %110 = arith.divf %108, %109 : vector<8x128xf32>
    %111 = vector.extract_strided_slice %98 {offsets = [0, 256], sizes = [8, 128], strides = [1, 1]} : vector<8x512xf32> to vector<8x128xf32>
    %112 = math.tanh %111 : vector<8x128xf32>
    %113 = vector.extract_strided_slice %98 {offsets = [0, 384], sizes = [8, 128], strides = [1, 1]} : vector<8x512xf32> to vector<8x128xf32>
    %114 = arith.negf %113 : vector<8x128xf32>
    %115 = math.exp %114 : vector<8x128xf32>
    %cst_27 = arith.constant 1.000000e+00 : f32
    %116 = vector.broadcast %cst_27 : f32 to vector<8x128xf32>
    %117 = arith.addf %116, %115 : vector<8x128xf32>
    %118 = arith.divf %116, %117 : vector<8x128xf32>
    %119 = arith.mulf %110, %93 : vector<8x128xf32>
    %120 = arith.mulf %104, %112 : vector<8x128xf32>
    %121 = arith.addf %119, %120 : vector<8x128xf32>
    %122 = math.tanh %121 : vector<8x128xf32>
    %123 = arith.mulf %118, %122 : vector<8x128xf32>
    %c0_28 = arith.constant 0 : index
    %c0_29 = arith.constant 0 : index
    %124 = vector.load %arg10[%c0_28, %c0_29] : memref<8x128xf32, #tpu.memory_space<vmem>>, vector<8x128xf32>
    tpu.vector_store %arg10[%c0_28, %c0_29], %123 {strides = array<i32>} : memref<8x128xf32, #tpu.memory_space<vmem>>, vector<8x128xf32>,
    %c0_30 = arith.constant 0 : index
    %c0_31 = arith.constant 0 : index
    %125 = vector.load %arg11[%c0_30, %c0_31] : memref<8x128xf32, #tpu.memory_space<vmem>>, vector<8x128xf32>
    tpu.vector_store %arg11[%c0_30, %c0_31], %121 {strides = array<i32>} : memref<8x128xf32, #tpu.memory_space<vmem>>, vector<8x128xf32>,
    %c1_i32 = arith.constant 1 : i32
    %126 = arith.cmpi eq, %arg0, %c1_i32 : i32
    %127 = arith.extui %126 : i1 to i32
    %c0_i32_32 = arith.constant 0 : i32
    %128 = arith.cmpi ne, %127, %c0_i32_32 : i32
    scf.if %128 {
      %cst_33 = arith.constant 0.000000e+00 : f32
      %129 = vector.broadcast %cst_33 : f32 to vector<8x128xf32>
      %130 = arith.maximumf %123, %129 : vector<8x128xf32>
      %c0_34 = arith.constant 0 : index
      %c0_35 = arith.constant 0 : index
      %131 = vector.load %arg5[%c0_34, %c0_35] : memref<128x128xf32, #tpu.memory_space<vmem>>, vector<128x128xf32>
      %cst_36 = arith.constant dense<0.000000e+00> : vector<8x128xf32>
      %132 = tpu.matmul %130, %131, %cst_36 {dimension_numbers = #tpu.dot_dimension_numbers<[1], [0], [0], [1], [0, 0, 1, 1], [], []>} : vector<8x128xf32>, vector<128x128xf32>, vector<8x128xf32> -> vector<8x128xf32>
      %c0_37 = arith.constant 0 : index
      %c0_38 = arith.constant 0 : index
      %133 = vector.load %arg6[%c0_37, %c0_38] : memref<1x128xf32, #tpu.memory_space<vmem>>, vector<1x128xf32>
      %134 = vector.broadcast %133 : vector<1x128xf32> to vector<8x128xf32>
      %135 = arith.addf %132, %134 : vector<8x128xf32>
      %cst_39 = arith.constant 0.000000e+00 : f32
      %136 = vector.broadcast %cst_39 : f32 to vector<8x128xf32>
      %137 = arith.maximumf %135, %136 : vector<8x128xf32>
      %c0_40 = arith.constant 0 : index
      %c0_41 = arith.constant 0 : index
      %138 = vector.load %arg7[%c0_40, %c0_41] : memref<128x128xf32, #tpu.memory_space<vmem>>, vector<128x128xf32>
      %cst_42 = arith.constant dense<0.000000e+00> : vector<8x128xf32>
      %139 = tpu.matmul %137, %138, %cst_42 {dimension_numbers = #tpu.dot_dimension_numbers<[1], [0], [0], [1], [0, 0, 1, 1], [], []>} : vector<8x128xf32>, vector<128x128xf32>, vector<8x128xf32> -> vector<8x128xf32>
      %c0_43 = arith.constant 0 : index
      %c0_44 = arith.constant 0 : index
      %140 = vector.load %arg8[%c0_43, %c0_44] : memref<1x128xf32, #tpu.memory_space<vmem>>, vector<1x128xf32>
      %141 = vector.broadcast %140 : vector<1x128xf32> to vector<8x128xf32>
      %142 = arith.addf %139, %141 : vector<8x128xf32>
      %c0_45 = arith.constant 0 : index
      %c0_46 = arith.constant 0 : index
      %143 = vector.load %arg9[%c0_45, %c0_46] : memref<8x128xf32, #tpu.memory_space<vmem>>, vector<8x128xf32>
      tpu.vector_store %arg9[%c0_45, %c0_46], %142 {strides = array<i32>} : memref<8x128xf32, #tpu.memory_space<vmem>>, vector<8x128xf32>,
    } else {
    }
    return
  }
  func.func @transform_0(%arg0: i32) -> (i32, i32) {
    %c0_i32 = arith.constant 0 : i32
    %c0_i32_0 = arith.constant 0 : i32
    return %arg0, %c0_i32 : i32, i32
  }
  func.func @transform_1(%arg0: i32) -> (i32, i32) {
    %c0_i32 = arith.constant 0 : i32
    %c0_i32_0 = arith.constant 0 : i32
    %c0_i32_1 = arith.constant 0 : i32
    return %c0_i32, %c0_i32_0 : i32, i32
  }
  func.func @transform_2(%arg0: i32) -> (i32, i32) {
    %c0_i32 = arith.constant 0 : i32
    %c0_i32_0 = arith.constant 0 : i32
    %c0_i32_1 = arith.constant 0 : i32
    return %c0_i32, %c0_i32_0 : i32, i32
  }
  func.func @transform_3(%arg0: i32) -> (i32, i32) {
    %c0_i32 = arith.constant 0 : i32
    %c0_i32_0 = arith.constant 0 : i32
    %c0_i32_1 = arith.constant 0 : i32
    return %c0_i32, %c0_i32_0 : i32, i32
  }
  func.func @transform_4(%arg0: i32) -> (i32, i32) {
    %c0_i32 = arith.constant 0 : i32
    %c0_i32_0 = arith.constant 0 : i32
    %c0_i32_1 = arith.constant 0 : i32
    return %c0_i32, %c0_i32_0 : i32, i32
  }
  func.func @transform_5(%arg0: i32) -> (i32, i32) {
    %c0_i32 = arith.constant 0 : i32
    %c0_i32_0 = arith.constant 0 : i32
    %c0_i32_1 = arith.constant 0 : i32
    return %c0_i32, %c0_i32_0 : i32, i32
  }
  func.func @transform_6(%arg0: i32) -> (i32, i32) {
    %c0_i32 = arith.constant 0 : i32
    %c0_i32_0 = arith.constant 0 : i32
    %c0_i32_1 = arith.constant 0 : i32
    return %c0_i32, %c0_i32_0 : i32, i32
  }
  func.func @transform_7(%arg0: i32) -> (i32, i32) {
    %c0_i32 = arith.constant 0 : i32
    %c0_i32_0 = arith.constant 0 : i32
    %c0_i32_1 = arith.constant 0 : i32
    return %c0_i32, %c0_i32_0 : i32, i32
  }
  func.func @transform_8(%arg0: i32) -> (i32, i32) {
    %c0_i32 = arith.constant 0 : i32
    %c0_i32_0 = arith.constant 0 : i32
    %c0_i32_1 = arith.constant 0 : i32
    return %c0_i32, %c0_i32_0 : i32, i32
  }
}

</mosaic_0001>

<llo_original>
// kernel: tpu_custom_call.1
$region0: #{tpu_custom_call.1}
  #allocation0 [shape = 'u32[]', space=smem, size = 0x4, offset = 0x4, fixed_abs, tag = 'smem constant byte address 0x4 - core index']
  #allocation1 [shape = 'u32[144,128]{1,0:T(1,128)}', space=vmem, size = 0x12000, scoped, tag = 'internal scratch']
  #allocation2 [shape = 'f32[8,128]{1,0:T(8,128)}', space=vmem, size = 0x1000, scoped, tag = 'scratch operand']
  #allocation3 [shape = 'f32[8,128]{1,0:T(8,128)}', space=vmem, size = 0x1000, scoped, tag = 'scratch operand']
  %s0 = inlined_call_operand.vmem [shape: f32[64,4], index: 0, kind: input, shape index: {}]
  %s1 = inlined_call_operand.vmem [shape: f32[4,512], index: 1, kind: input, shape index: {}]
  %s2 = inlined_call_operand.hbm [shape: f32[128,512], index: 2, kind: input, shape index: {}]
  %s3 = inlined_call_operand.vmem [shape: f32[1,512], index: 3, kind: input, shape index: {}]
  %s4 = inlined_call_operand.hbm [shape: f32[128,128], index: 4, kind: input, shape index: {}]
  %s5 = inlined_call_operand.vmem [shape: f32[1,128], index: 5, kind: input, shape index: {}]
  %s6 = inlined_call_operand.hbm [shape: f32[128,128], index: 6, kind: input, shape index: {}]
  %s7 = inlined_call_operand.vmem [shape: f32[1,128], index: 7, kind: input, shape index: {}]
  %s8 = inlined_call_operand.hbm [shape: f32[8,128], index: 8, kind: output, shape index: {}]
  %s9 = sld [smem:[#allocation0]]
  $region85: #{tpu_custom_call.1} parent=0
    _
  %s11 = ssub.s32 1, %s9
  %s12 = scalar_select 0, %s11, %s9
  $region1: #{tpu_custom_call.1} parent=0
    #allocation4 [shape = 'u8[262144]{0}', space=vmem, size = 0x40000, scoped, tag = 'input window, operand 2, single buffered']
    #allocation5 [shape = 's32[2]{0}', space=sflag, size = 0x8, scoped, tag = 'scoped memory for tpu_custom_call.1']
    #allocation6 [shape = 's32[2]{0}', space=sflag, size = 0x8, scoped, tag = 'scoped memory for tpu_custom_call.1']
    #allocation7 [shape = 'u8[65536]{0}', space=vmem, size = 0x10000, scoped, tag = 'input window, operand 4, single buffered']
    #allocation8 [shape = 's32[1]{0}', space=sflag, size = 0x4, scoped, tag = 'scoped memory for tpu_custom_call.1']
    #allocation9 [shape = 'u8[65536]{0}', space=vmem, size = 0x10000, scoped, tag = 'input window, operand 6, single buffered']
    #allocation10 [shape = 'u8[4096]{0}', space=vmem, size = 0x1000, scoped, tag = 'output window, operand 0, single buffered']
    %13 = vsyncpa [#allocation5], 0
    %14 = vsyncpa [#allocation8], 0
    %15 = vsyncpa [#allocation6], 0
    loop: start=0, step=1, limit=4
    $region2: #{tpu_custom_call.1} parent=1 // loop_pre_header
      _
    $region3: #{tpu_custom_call.1} parent=1 // loop_header
      %s17 = sphi 0, %s21
      %p18 = scmp.ge.s32.totalorder %s17, 4
      %s27 = sphi 0, %s29
      %s30 = sphi 0, %s27
      %s31 = sphi 0, %s30
      %s47 = sphi 0, %s31
      %s51 = sphi 0, %s51
      %s53 = sphi 0, %s51
      %s54 = sphi 0, %s53
      %s68 = sphi 0, %s54
      %s72 = sphi 0, %s72
      %s74 = sphi 0, %s72
      %s75 = sphi 0, %s74
      %s89 = sphi 0, %s75
      %s93 = sphi 0, %s93
      %s95 = sphi 0, %s93
      %s96 = sphi 0, %s95
      %s110 = sphi 0, %s96
      %s114 = sphi 0, %s114
      %s116 = sphi 0, %s114
      %s117 = sphi 0, %s116
      %s131 = sphi 0, %s117
      %s135 = sphi 0, %s135
      %s137 = sphi 0, %s135
      %s138 = sphi 0, %s137
      %s152 = sphi 0, %s138
      %s156 = sphi 0, %s156
      %s158 = sphi 0, %s156
      %s159 = sphi 0, %s158
      %s173 = sphi 0, %s159
      %s177 = sphi 0, %s177
      %s179 = sphi 0, %s177
      %s180 = sphi 0, %s179
      %s194 = sphi 0, %s180
      %s198 = sphi 0, %s198
      %s200 = sphi 0, %s198
      %s201 = sphi 0, %s200
      %s215 = sphi 0, %s201
    $region4: #{tpu_custom_call.1} parent=1 // loop_header_branch
      %20 = sbr.rel (%p18) target = $region8
    $region5: #{tpu_custom_call.1} parent=1 // loop_body
      %s22 = ssub.s32 %s17, 1
      %s23 = ssub.s32 %s17, 2
      %s24 = sadd.s32 %s17, 1
      %s25 = ssub.s32 %s17, %s24
      %p26 = scmp.eq.s32.totalorder %s25, 0
      %s28 = sadd.s32 %s27, 1
      %s29 = scalar_select %p26, %s27, %s28
      %p32 = pneg %p26
      %p33 = scmp.eq.s32.totalorder %s17, 1
      %p34 = por %p32, %p33
      %p35 = scmp.ne.s32.totalorder %s27, %s30
      %p36 = scmp.eq.s32.totalorder %s17, 0
      %p37 = por %p35, %p36
      %p38 = scmp.ne.s32.totalorder %s27, %s30
      %p39 = scmp.eq.s32.totalorder %s22, 1
      %p40 = por %p38, %p39
      %p41 = scmp.ne.s32.totalorder %s30, %s31
      %p42 = scmp.eq.s32.totalorder %s22, 0
      %p43 = por %p41, %p42
      %p44 = scmp.ne.s32.totalorder %s30, %s31
      %p45 = scmp.eq.s32.totalorder %s23, 1
      %p46 = por %p44, %p45
      %p48 = scmp.ne.s32.totalorder %s31, %s47
      %p49 = scmp.eq.s32.totalorder %s23, 0
      %p50 = por %p48, %p49
      %s52 = sadd.s32 %s51, 1
      %p55 = scmp.eq.s32.totalorder %s17, 1
      %p56 = scmp.ne.s32.totalorder %s51, %s53
      %p57 = scmp.eq.s32.totalorder %s17, 0
      %p58 = por %p56, %p57
      %p59 = scmp.ne.s32.totalorder %s51, %s53
      %p60 = scmp.eq.s32.totalorder %s22, 1
      %p61 = por %p59, %p60
      %p62 = scmp.ne.s32.totalorder %s53, %s54
      %p63 = scmp.eq.s32.totalorder %s22, 0
      %p64 = por %p62, %p63
      %p65 = scmp.ne.s32.totalorder %s53, %s54
      %p66 = scmp.eq.s32.totalorder %s23, 1
      %p67 = por %p65, %p66
      %p69 = scmp.ne.s32.totalorder %s54, %s68
      %p70 = scmp.eq.s32.totalorder %s23, 0
      %p71 = por %p69, %p70
      %s73 = sadd.s32 %s72, 1
      %p76 = scmp.eq.s32.totalorder %s17, 1
      %p77 = scmp.ne.s32.totalorder %s72, %s74
      %p78 = scmp.eq.s32.totalorder %s17, 0
      %p79 = por %p77, %p78
      %p80 = scmp.ne.s32.totalorder %s72, %s74
      %p81 = scmp.eq.s32.totalorder %s22, 1
      %p82 = por %p80, %p81
      %p83 = scmp.ne.s32.totalorder %s74, %s75
      %p84 = scmp.eq.s32.totalorder %s22, 0
      %p85 = por %p83, %p84
      %p86 = scmp.ne.s32.totalorder %s74, %s75
      %p87 = scmp.eq.s32.totalorder %s23, 1
      %p88 = por %p86, %p87
      %p90 = scmp.ne.s32.totalorder %s75, %s89
      %p91 = scmp.eq.s32.totalorder %s23, 0
      %p92 = por %p90, %p91
      %s94 = sadd.s32 %s93, 1
      %p97 = scmp.eq.s32.totalorder %s17, 1
      %p98 = scmp.ne.s32.totalorder %s93, %s95
      %p99 = scmp.eq.s32.totalorder %s17, 0
      %p100 = por %p98, %p99
      %p101 = scmp.ne.s32.totalorder %s93, %s95
      %p102 = scmp.eq.s32.totalorder %s22, 1
      %p103 = por %p101, %p102
      %p104 = scmp.ne.s32.totalorder %s95, %s96
      %p105 = scmp.eq.s32.totalorder %s22, 0
      %p106 = por %p104, %p105
      %p107 = scmp.ne.s32.totalorder %s95, %s96
      %p108 = scmp.eq.s32.totalorder %s23, 1
      %p109 = por %p107, %p108
      %p111 = scmp.ne.s32.totalorder %s96, %s110
      %p112 = scmp.eq.s32.totalorder %s23, 0
      %p113 = por %p111, %p112
      %s115 = sadd.s32 %s114, 1
      %p118 = scmp.eq.s32.totalorder %s17, 1
      %p119 = scmp.ne.s32.totalorder %s114, %s116
      %p120 = scmp.eq.s32.totalorder %s17, 0
      %p121 = por %p119, %p120
      %p122 = scmp.ne.s32.totalorder %s114, %s116
      %p123 = scmp.eq.s32.totalorder %s22, 1
      %p124 = por %p122, %p123
      %p125 = scmp.ne.s32.totalorder %s116, %s117
      %p126 = scmp.eq.s32.totalorder %s22, 0
      %p127 = por %p125, %p126
      %p128 = scmp.ne.s32.totalorder %s116, %s117
      %p129 = scmp.eq.s32.totalorder %s23, 1
      %p130 = por %p128, %p129
      %p132 = scmp.ne.s32.totalorder %s117, %s131
      %p133 = scmp.eq.s32.totalorder %s23, 0
      %p134 = por %p132, %p133
      %s136 = sadd.s32 %s135, 1
      %p139 = scmp.eq.s32.totalorder %s17, 1
      %p140 = scmp.ne.s32.totalorder %s135, %s137
      %p141 = scmp.eq.s32.totalorder %s17, 0
      %p142 = por %p140, %p141
      %p143 = scmp.ne.s32.totalorder %s135, %s137
      %p144 = scmp.eq.s32.totalorder %s22, 1
      %p145 = por %p143, %p144
      %p146 = scmp.ne.s32.totalorder %s137, %s138
      %p147 = scmp.eq.s32.totalorder %s22, 0
      %p148 = por %p146, %p147
      %p149 = scmp.ne.s32.totalorder %s137, %s138
      %p150 = scmp.eq.s32.totalorder %s23, 1
      %p151 = por %p149, %p150
      %p153 = scmp.ne.s32.totalorder %s138, %s152
      %p154 = scmp.eq.s32.totalorder %s23, 0
      %p155 = por %p153, %p154
      %s157 = sadd.s32 %s156, 1
      %p160 = scmp.eq.s32.totalorder %s17, 1
      %p161 = scmp.ne.s32.totalorder %s156, %s158
      %p162 = scmp.eq.s32.totalorder %s17, 0
      %p163 = por %p161, %p162
      %p164 = scmp.ne.s32.totalorder %s156, %s158
      %p165 = scmp.eq.s32.totalorder %s22, 1
      %p166 = por %p164, %p165
      %p167 = scmp.ne.s32.totalorder %s158, %s159
      %p168 = scmp.eq.s32.totalorder %s22, 0
      %p169 = por %p167, %p168
      %p170 = scmp.ne.s32.totalorder %s158, %s159
      %p171 = scmp.eq.s32.totalorder %s23, 1
      %p172 = por %p170, %p171
      %p174 = scmp.ne.s32.totalorder %s159, %s173
      %p175 = scmp.eq.s32.totalorder %s23, 0
      %p176 = por %p174, %p175
      %s178 = sadd.s32 %s177, 1
      %p181 = scmp.eq.s32.totalorder %s17, 1
      %p182 = scmp.ne.s32.totalorder %s177, %s179
      %p183 = scmp.eq.s32.totalorder %s17, 0
      %p184 = por %p182, %p183
      %p185 = scmp.ne.s32.totalorder %s177, %s179
      %p186 = scmp.eq.s32.totalorder %s22, 1
      %p187 = por %p185, %p186
      %p188 = scmp.ne.s32.totalorder %s179, %s180
      %p189 = scmp.eq.s32.totalorder %s22, 0
      %p190 = por %p188, %p189
      %p191 = scmp.ne.s32.totalorder %s179, %s180
      %p192 = scmp.eq.s32.totalorder %s23, 1
      %p193 = por %p191, %p192
      %p195 = scmp.ne.s32.totalorder %s180, %s194
      %p196 = scmp.eq.s32.totalorder %s23, 0
      %p197 = por %p195, %p196
      %s199 = sadd.s32 %s198, 1
      %p202 = scmp.eq.s32.totalorder %s17, 1
      %p203 = scmp.ne.s32.totalorder %s198, %s200
      %p204 = scmp.eq.s32.totalorder %s17, 0
      %p205 = por %p203, %p204
      %p206 = scmp.ne.s32.totalorder %s198, %s200
      %p207 = scmp.eq.s32.totalorder %s22, 1
      %p208 = por %p206, %p207
      %p209 = scmp.ne.s32.totalorder %s200, %s201
      %p210 = scmp.eq.s32.totalorder %s22, 0
      %p211 = por %p209, %p210
      %p212 = scmp.ne.s32.totalorder %s200, %s201
      %p213 = scmp.eq.s32.totalorder %s23, 1
      %p214 = por %p212, %p213
      %p216 = scmp.ne.s32.totalorder %s201, %s215
      %p217 = scmp.eq.s32.totalorder %s23, 0
      %p218 = por %p216, %p217
      %p219 = scmp.le.s32.totalorder 1, %s17
      %p220 = scmp.lt.s32.totalorder %s17, 3
      %p221 = pnand %p219, %p220
      %p222 = pneg %p221
      // Predicated region
      $region9: #{tpu_custom_call.1} parent=5 // pred_check
        _
      $region10: #{tpu_custom_call.1} parent=5 // pred_check_branch
        %224 = sbr.rel (%p221) target = $region12
      $region11: #{tpu_custom_call.1} parent=5 // pred_region
        %s225 = ssub.s32 %s17, 1
        // Predicated region
        $region13: #{tpu_custom_call.1} parent=11 // pred_check
          %p226 = pneg %p64
        $region14: #{tpu_custom_call.1} parent=11 // pred_check_branch
          %228 = sbr.rel (%p226) target = $region16
        $region15: #{tpu_custom_call.1} parent=11 // pred_region
          _
        $region16: #{tpu_custom_call.1} parent=11 // pred_fallthru
          _
        // Predicated region
        $region17: #{tpu_custom_call.1} parent=11 // pred_check
          %p229 = pneg %p85
        $region18: #{tpu_custom_call.1} parent=11 // pred_check_branch
          %231 = sbr.rel (%p229) target = $region20
        $region19: #{tpu_custom_call.1} parent=11 // pred_region
          %s233 = ssub.s32 8192, 8192
          %234 = vsyncadd [#allocation5], %s233
          %s235 = sshll.u32 [#allocation4], 4
          %s236 = int_to_ptr.vmem [resolvable:$true] %s235
          %241 = dma.hbm_to_vmem [thread:$0]  %s2, 8192, %s236, [#allocation5], 512, 512, 32
        $region20: #{tpu_custom_call.1} parent=11 // pred_fallthru
          _
        // Predicated region
        $region21: #{tpu_custom_call.1} parent=11 // pred_check
          %p242 = pneg %p106
        $region22: #{tpu_custom_call.1} parent=11 // pred_check_branch
          %244 = sbr.rel (%p242) target = $region24
        $region23: #{tpu_custom_call.1} parent=11 // pred_region
          _
        $region24: #{tpu_custom_call.1} parent=11 // pred_fallthru
          _
        // Predicated region
        $region25: #{tpu_custom_call.1} parent=11 // pred_check
          %p245 = pneg %p127
        $region26: #{tpu_custom_call.1} parent=11 // pred_check_branch
          %247 = sbr.rel (%p245) target = $region28
        $region27: #{tpu_custom_call.1} parent=11 // pred_region
          %s249 = ssub.s32 2048, 2048
          %250 = vsyncadd [#allocation8], %s249
          %s251 = sshll.u32 [#allocation7], 4
          %s252 = int_to_ptr.vmem [resolvable:$true] %s251
          %257 = dma.hbm_to_vmem [thread:$0]  %s4, 2048, %s252, [#allocation8], 128, 128, 8
        $region28: #{tpu_custom_call.1} parent=11 // pred_fallthru
          _
        // Predicated region
        $region29: #{tpu_custom_call.1} parent=11 // pred_check
          %p258 = pneg %p148
        $region30: #{tpu_custom_call.1} parent=11 // pred_check_branch
          %260 = sbr.rel (%p258) target = $region32
        $region31: #{tpu_custom_call.1} parent=11 // pred_region
          _
        $region32: #{tpu_custom_call.1} parent=11 // pred_fallthru
          _
        // Predicated region
        $region33: #{tpu_custom_call.1} parent=11 // pred_check
          %p261 = pneg %p169
        $region34: #{tpu_custom_call.1} parent=11 // pred_check_branch
          %263 = sbr.rel (%p261) target = $region36
        $region35: #{tpu_custom_call.1} parent=11 // pred_region
          %s265 = ssub.s32 2048, 2048
          %266 = vsyncadd [#allocation8], %s265
          %s267 = sshll.u32 [#allocation9], 4
          %s268 = int_to_ptr.vmem [resolvable:$true] %s267
          %273 = dma.hbm_to_vmem [thread:$0]  %s6, 2048, %s268, [#allocation8], 128, 128, 8
        $region36: #{tpu_custom_call.1} parent=11 // pred_fallthru
          _
        // Predicated region
        $region37: #{tpu_custom_call.1} parent=11 // pred_check
          %p274 = pneg %p190
        $region38: #{tpu_custom_call.1} parent=11 // pred_check_branch
          %276 = sbr.rel (%p274) target = $region40
        $region39: #{tpu_custom_call.1} parent=11 // pred_region
          _
        $region40: #{tpu_custom_call.1} parent=11 // pred_fallthru
          _
      $region12: #{tpu_custom_call.1} parent=5 // pred_fallthru
        _
      %p277 = scmp.lt.s32.totalorder %s17, 2
      // Predicated region
      $region41: #{tpu_custom_call.1} parent=5 // pred_check
        %p278 = pneg %p277
      $region42: #{tpu_custom_call.1} parent=5 // pred_check_branch
        %280 = sbr.rel (%p278) target = $region44
      $region43: #{tpu_custom_call.1} parent=5 // pred_region
        // Predicated region
        $region45: #{tpu_custom_call.1} parent=43 // pred_check
          %p281 = pneg %p37
        $region46: #{tpu_custom_call.1} parent=43 // pred_check_branch
          %283 = sbr.rel (%p281) target = $region48
        $region47: #{tpu_custom_call.1} parent=43 // pred_region
          %s284 = smul.u32 4, %s17
          %p285 = scmp.lt.s32.totalorder %s284, 7
          %s286 = scalar_select %p285, %s284, 7
          %s287 = smul.addr %s286, 8
          %s288 = scalar_lea.vmem %s0, %s287
          %s289 = smul.u32 4, %s17
        $region48: #{tpu_custom_call.1} parent=43 // pred_fallthru
          _
      $region44: #{tpu_custom_call.1} parent=5 // pred_fallthru
        _
      %p290 = scmp.le.s32.totalorder 1, %s17
      %p291 = scmp.lt.s32.totalorder %s17, 3
      %p292 = pnand %p290, %p291
      %p293 = pneg %p292
      // Predicated region
      $region49: #{tpu_custom_call.1} parent=5 // pred_check
        _
      $region50: #{tpu_custom_call.1} parent=5 // pred_check_branch
        %295 = sbr.rel (%p292) target = $region52
      $region51: #{tpu_custom_call.1} parent=5 // pred_region
        %s296 = ssub.s32 %s17, 1
        // Predicated region
        $region53: #{tpu_custom_call.1} parent=51 // pred_check
          %p297 = pneg %p85
        $region54: #{tpu_custom_call.1} parent=51 // pred_check_branch
          %299 = sbr.rel (%p297) target = $region56
        $region55: #{tpu_custom_call.1} parent=51 // pred_region
          %300 = dma.done [#allocation5], 8192
        $region56: #{tpu_custom_call.1} parent=51 // pred_fallthru
          _
        // Predicated region
        $region57: #{tpu_custom_call.1} parent=51 // pred_check
          %p301 = pneg %p127
        $region58: #{tpu_custom_call.1} parent=51 // pred_check_branch
          %303 = sbr.rel (%p301) target = $region60
        $region59: #{tpu_custom_call.1} parent=51 // pred_region
          %304 = dma.done [#allocation8], 2048
        $region60: #{tpu_custom_call.1} parent=51 // pred_fallthru
          _
        // Predicated region
        $region61: #{tpu_custom_call.1} parent=51 // pred_check
          %p305 = pneg %p169
        $region62: #{tpu_custom_call.1} parent=51 // pred_check_branch
          %307 = sbr.rel (%p305) target = $region64
        $region63: #{tpu_custom_call.1} parent=51 // pred_region
          %308 = dma.done [#allocation8], 2048
        $region64: #{tpu_custom_call.1} parent=51 // pred_fallthru
          _
        %s309 = smul.u32 4, %s22
        %p310 = scmp.lt.s32.totalorder %s309, 7
        %s311 = scalar_select %p310, %s309, 7
        %s312 = smul.addr %s311, 8
        %s313 = scalar_lea.vmem %s0, %s312
        %p314 = pneg %p43
        %p315 = pneg %p40
        %p316 = pneg %p64
        %p317 = pneg %p61
        %p318 = pneg %p85
        %p319 = pneg %p82
        %p320 = pneg %p106
        %p321 = pneg %p103
        %p322 = pneg %p127
        %p323 = pneg %p124
        %p324 = pneg %p148
        %p325 = pneg %p145
        %p326 = pneg %p169
        %p327 = pneg %p166
        %p328 = pneg %p190
        %p329 = pneg %p187
        %p330 = pneg %p211
        %p331 = pneg %p208
        %s332 = smul.u32 4, %s22
        %p333 = scmp.lt.s32.totalorder %s332, 7
        %s334 = scalar_select %p333, %s332, 7
        %s335 = smul.addr %s334, 8
        %s336 = scalar_lea.vmem %s0, %s335
        %s337 = smul.u32 4, %s22
        %p338 = scmp.eq.s32.totalorder %s22, 0
        // Predicated region
        $region65: #{tpu_custom_call.1} parent=51 // pred_check
          %p339 = pneg %p338
        $region66: #{tpu_custom_call.1} parent=51 // pred_check_branch
          %341 = sbr.rel (%p339) target = $region68
        $region67: #{tpu_custom_call.1} parent=51 // pred_region
          %342 = vst [vmem:[#allocation2] sm:$0xff] 0.0
          %343 = vst [vmem:[#allocation3] sm:$0xff] 0.0
        $region68: #{tpu_custom_call.1} parent=51 // pred_fallthru
          _
        %v344 = vld [vmem:[#allocation4] sm:$0xff]
        %v345 = vld [vmem:[#allocation4 + $0x8] sm:$0xff]
        %v346 = vld [vmem:[#allocation4 + $0x10] sm:$0xff]
        %v347 = vld [vmem:[#allocation4 + $0x18] sm:$0xff]
        %v348 = vld [vmem:[#allocation4 + $0x20] sm:$0xff]
        %v349 = vld [vmem:[#allocation4 + $0x28] sm:$0xff]
        %v350 = vld [vmem:[#allocation4 + $0x30] sm:$0xff]
        %v351 = vld [vmem:[#allocation4 + $0x38] sm:$0xff]
        %v352 = vld [vmem:[#allocation4 + $0x40] sm:$0xff]
        %v353 = vld [vmem:[#allocation4 + $0x48] sm:$0xff]
        %v354 = vld [vmem:[#allocation4 + $0x50] sm:$0xff]
        %v355 = vld [vmem:[#allocation4 + $0x58] sm:$0xff]
        %v356 = vld [vmem:[#allocation4 + $0x60] sm:$0xff]
        %v357 = vld [vmem:[#allocation4 + $0x68] sm:$0xff]
        %v358 = vld [vmem:[#allocation4 + $0x70] sm:$0xff]
        %v359 = vld [vmem:[#allocation4 + $0x78] sm:$0xff]
        %v360 = vld [vmem:[#allocation4 + $0x80] sm:$0xff]
        %v361 = vld [vmem:[#allocation4 + $0x88] sm:$0xff]
        %v362 = vld [vmem:[#allocation4 + $0x90] sm:$0xff]
        %v363 = vld [vmem:[#allocation4 + $0x98] sm:$0xff]
        %v364 = vld [vmem:[#allocation4 + $0xa0] sm:$0xff]
        %v365 = vld [vmem:[#allocation4 + $0xa8] sm:$0xff]
        %v366 = vld [vmem:[#allocation4 + $0xb0] sm:$0xff]
        %v367 = vld [vmem:[#allocation4 + $0xb8] sm:$0xff]
        %v368 = vld [vmem:[#allocation4 + $0xc0] sm:$0xff]
        %v369 = vld [vmem:[#allocation4 + $0xc8] sm:$0xff]
        %v370 = vld [vmem:[#allocation4 + $0xd0] sm:$0xff]
        %v371 = vld [vmem:[#allocation4 + $0xd8] sm:$0xff]
        %v372 = vld [vmem:[#allocation4 + $0xe0] sm:$0xff]
        %v373 = vld [vmem:[#allocation4 + $0xe8] sm:$0xff]
        %v374 = vld [vmem:[#allocation4 + $0xf0] sm:$0xff]
        %v375 = vld [vmem:[#allocation4 + $0xf8] sm:$0xff]
        %v376 = vld [vmem:[#allocation4 + $0x100] sm:$0xff]
        %v377 = vld [vmem:[#allocation4 + $0x108] sm:$0xff]
        %v378 = vld [vmem:[#allocation4 + $0x110] sm:$0xff]
        %v379 = vld [vmem:[#allocation4 + $0x118] sm:$0xff]
        %v380 = vld [vmem:[#allocation4 + $0x120] sm:$0xff]
        %v381 = vld [vmem:[#allocation4 + $0x128] sm:$0xff]
        %v382 = vld [vmem:[#allocation4 + $0x130] sm:$0xff]
        %v383 = vld [vmem:[#allocation4 + $0x138] sm:$0xff]
        %v384 = vld [vmem:[#allocation4 + $0x140] sm:$0xff]
        %v385 = vld [vmem:[#allocation4 + $0x148] sm:$0xff]
        %v386 = vld [vmem:[#allocation4 + $0x150] sm:$0xff]
        %v387 = vld [vmem:[#allocation4 + $0x158] sm:$0xff]
        %v388 = vld [vmem:[#allocation4 + $0x160] sm:$0xff]
        %v389 = vld [vmem:[#allocation4 + $0x168] sm:$0xff]
        %v390 = vld [vmem:[#allocation4 + $0x170] sm:$0xff]
        %v391 = vld [vmem:[#allocation4 + $0x178] sm:$0xff]
        %v392 = vld [vmem:[#allocation4 + $0x180] sm:$0xff]
        %v393 = vld [vmem:[#allocation4 + $0x188] sm:$0xff]
        %v394 = vld [vmem:[#allocation4 + $0x190] sm:$0xff]
        %v395 = vld [vmem:[#allocation4 + $0x198] sm:$0xff]
        %v396 = vld [vmem:[#allocation4 + $0x1a0] sm:$0xff]
        %v397 = vld [vmem:[#allocation4 + $0x1a8] sm:$0xff]
        %v398 = vld [vmem:[#allocation4 + $0x1b0] sm:$0xff]
        %v399 = vld [vmem:[#allocation4 + $0x1b8] sm:$0xff]
        %v400 = vld [vmem:[#allocation4 + $0x1c0] sm:$0xff]
        %v401 = vld [vmem:[#allocation4 + $0x1c8] sm:$0xff]
        %v402 = vld [vmem:[#allocation4 + $0x1d0] sm:$0xff]
        %v403 = vld [vmem:[#allocation4 + $0x1d8] sm:$0xff]
        %v404 = vld [vmem:[#allocation4 + $0x1e0] sm:$0xff]
        %v405 = vld [vmem:[#allocation4 + $0x1e8] sm:$0xff]
        %v406 = vld [vmem:[#allocation4 + $0x1f0] sm:$0xff]
        %v407 = vld [vmem:[#allocation4 + $0x1f8] sm:$0xff]
        %v408 = vld [vmem:[%s336] sm:$0xff]
        %v409 = vld [vmem:[%s336 + $0x8] sm:$0xff]
        %v410 = vld [vmem:[%s336 + $0x10] sm:$0xff]
        %v411 = vld [vmem:[%s336 + $0x18] sm:$0xff]
        %v412 = vld [vmem:[%s1] sm:$0xff]
        %v413 = vld [vmem:[%s1 + $0x8] sm:$0xff]
        %v414 = vld [vmem:[%s3] sm:$0xf]
        %v416 = vlaneseq
        %v417 = vshrl.u32 %v416, 7
        %v418 = vsub.s32 0, %v417
        %v419 = vrot.slane %v414, %v418
        %v420 = vlaneseq
        %v421 = vshrl.u32 %v420, 7
        %v422 = vsub.s32 1, %v421
        %v423 = vrot.slane %v414, %v422
        %v424 = vlaneseq
        %v425 = vshrl.u32 %v424, 7
        %v426 = vsub.s32 2, %v425
        %v427 = vrot.slane %v414, %v426
        %v428 = vlaneseq
        %v429 = vshrl.u32 %v428, 7
        %v430 = vsub.s32 3, %v429
        %v431 = vrot.slane %v414, %v430
        %v438 = vcombine.high %v412, %v412
        %v439 = vcombine.high %v413, %v413
        %vm440 = vcmask 31744
        %v442 = vsel %vm440, %v408, 0
        %v445 = vsel %vm440, %v409, 0
        %v448 = vsel %vm440, %v410, 0
        %v451 = vsel %vm440, %v411, 0
        %vm453 = vcmask 1043456
        %v454 = vsel %vm453, %v412, 0
        %v456 = vsel %vm453, %v438, 0
        %v458 = vsel %vm453, %v413, 0
        %v460 = vsel %vm453, %v439, 0
        %462 = vmatprep.subr.mxu0 %v456
        %463 = vmatpush1.msra.mxu0 %v454
        %464 = vmatprep.subr.mxu0 0.0
        %465 = vmatpush1.msra.mxu0 0.0
        %466 = vmatprep.subr.mxu0 0.0
        %467 = vmatpush1.msra.mxu0 0.0
        %468 = vmatprep.subr.mxu0 0.0
        %469 = vmatpush1.msra.mxu0 0.0
        %470 = vmatprep.subr.mxu0 0.0
        %471 = vmatpush1.msra.mxu0 0.0
        %472 = vmatprep.subr.mxu0 0.0
        %473 = vmatpush1.msra.mxu0 0.0
        %474 = vmatprep.subr.mxu0 0.0
        %475 = vmatpush1.msra.mxu0 0.0
        %476 = vmatprep.subr.mxu0 0.0
        %477 = vmatpush1.msra.mxu0 0.0
        %478 = vmatprep.subr.mxu0 0.0
        %479 = vmatpush1.msra.mxu0 0.0
        %480 = vmatprep.subr.mxu0 0.0
        %481 = vmatpush1.msra.mxu0 0.0
        %482 = vmatprep.subr.mxu0 0.0
        %483 = vmatpush1.msra.mxu0 0.0
        %484 = vmatprep.subr.mxu0 0.0
        %485 = vmatpush1.msra.mxu0 0.0
        %486 = vmatprep.subr.mxu0 0.0
        %487 = vmatpush1.msra.mxu0 0.0
        %488 = vmatprep.subr.mxu0 0.0
        %489 = vmatpush1.msra.mxu0 0.0
        %490 = vmatprep.subr.mxu0 0.0
        %491 = vmatpush1.msra.mxu0 0.0
        %492 = vmatprep.subr.mxu0 0.0
        %493 = vmatpush1.msra.mxu0 0.0
        %494 = vmatprep.subr.mxu0 0.0
        %495 = vmatpush1.msra.mxu0 0.0
        %496 = vmatprep.subr.mxu0 0.0
        %497 = vmatpush1.msra.mxu0 0.0
        %498 = vmatprep.subr.mxu0 0.0
        %499 = vmatpush1.msra.mxu0 0.0
        %500 = vmatprep.subr.mxu0 0.0
        %501 = vmatpush1.msra.mxu0 0.0
        %502 = vmatprep.subr.mxu0 0.0
        %503 = vmatpush1.msra.mxu0 0.0
        %504 = vmatprep.subr.mxu0 0.0
        %505 = vmatpush1.msra.mxu0 0.0
        %506 = vmatprep.subr.mxu0 0.0
        %507 = vmatpush1.msra.mxu0 0.0
        %508 = vmatprep.subr.mxu0 0.0
        %509 = vmatpush1.msra.mxu0 0.0
        %510 = vmatprep.subr.mxu0 0.0
        %511 = vmatpush1.msra.mxu0 0.0
        %512 = vmatprep.subr.mxu0 0.0
        %513 = vmatpush1.msra.mxu0 0.0
        %514 = vmatprep.subr.mxu0 0.0
        %515 = vmatpush1.msra.mxu0 0.0
        %516 = vmatprep.subr.mxu0 0.0
        %517 = vmatpush1.msra.mxu0 0.0
        %518 = vmatprep.subr.mxu0 0.0
        %519 = vmatpush1.msra.mxu0 0.0
        %520 = vmatprep.subr.mxu0 0.0
        %521 = vmatpush1.msra.mxu0 0.0
        %522 = vmatprep.subr.mxu0 0.0
        %523 = vmatpush1.msra.mxu0 0.0
        %524 = vmatprep.subr.mxu0 0.0
        %525 = vmatpush1.msra.mxu0 0.0
        %526 = vmatprep.mubr.f32.mxu0 0.0
        %527 = vmatmul.mubr.f32.gmra.mrb[0].mxu0 %v442
        %v528 = vpop.f32.mrb[0].mxu0
        %v529 = vadd.f32 %v419, %v528
        %v530 = vpop.f32.mrb[0].mxu0
        %v531 = vadd.f32 %v423, %v530
        %532 = vmatprep.mubr.f32.mxu0 0.0
        %533 = vmatmul.mubr.f32.gmra.mrb[0].mxu0 %v445
        %v534 = vpop.f32.mrb[0].mxu0
        %v535 = vadd.f32 %v419, %v534
        %v536 = vpop.f32.mrb[0].mxu0
        %v537 = vadd.f32 %v423, %v536
        %538 = vmatprep.mubr.f32.mxu0 0.0
        %539 = vmatmul.mubr.f32.gmra.mrb[0].mxu0 %v448
        %v540 = vpop.f32.mrb[0].mxu0
        %v541 = vadd.f32 %v419, %v540
        %v542 = vpop.f32.mrb[0].mxu0
        %v543 = vadd.f32 %v423, %v542
        %544 = vmatprep.mubr.f32.mxu0 0.0
        %545 = vmatmul.mubr.f32.gmra.mrb[0].mxu0 %v451
        %v546 = vpop.f32.mrb[0].mxu0
        %v547 = vadd.f32 %v419, %v546
        %v548 = vpop.f32.mrb[0].mxu0
        %v549 = vadd.f32 %v423, %v548
        %550 = vdwg.mxu0
        %551 = vmatprep.subr.mxu0 %v460
        %552 = vmatpush1.msra.mxu0 %v458
        %553 = vmatprep.subr.mxu0 0.0
        %554 = vmatpush1.msra.mxu0 0.0
        %555 = vmatprep.subr.mxu0 0.0
        %556 = vmatpush1.msra.mxu0 0.0
        %557 = vmatprep.subr.mxu0 0.0
        %558 = vmatpush1.msra.mxu0 0.0
        %559 = vmatprep.subr.mxu0 0.0
        %560 = vmatpush1.msra.mxu0 0.0
        %561 = vmatprep.subr.mxu0 0.0
        %562 = vmatpush1.msra.mxu0 0.0
        %563 = vmatprep.subr.mxu0 0.0
        %564 = vmatpush1.msra.mxu0 0.0
        %565 = vmatprep.subr.mxu0 0.0
        %566 = vmatpush1.msra.mxu0 0.0
        %567 = vmatprep.subr.mxu0 0.0
        %568 = vmatpush1.msra.mxu0 0.0
        %569 = vmatprep.subr.mxu0 0.0
        %570 = vmatpush1.msra.mxu0 0.0
        %571 = vmatprep.subr.mxu0 0.0
        %572 = vmatpush1.msra.mxu0 0.0
        %573 = vmatprep.subr.mxu0 0.0
        %574 = vmatpush1.msra.mxu0 0.0
        %575 = vmatprep.subr.mxu0 0.0
        %576 = vmatpush1.msra.mxu0 0.0
        %577 = vmatprep.subr.mxu0 0.0
        %578 = vmatpush1.msra.mxu0 0.0
        %579 = vmatprep.subr.mxu0 0.0
        %580 = vmatpush1.msra.mxu0 0.0
        %581 = vmatprep.subr.mxu0 0.0
        %582 = vmatpush1.msra.mxu0 0.0
        %583 = vmatprep.subr.mxu0 0.0
        %584 = vmatpush1.msra.mxu0 0.0
        %585 = vmatprep.subr.mxu0 0.0
        %586 = vmatpush1.msra.mxu0 0.0
        %587 = vmatprep.subr.mxu0 0.0
        %588 = vmatpush1.msra.mxu0 0.0
        %589 = vmatprep.subr.mxu0 0.0
        %590 = vmatpush1.msra.mxu0 0.0
        %591 = vmatprep.subr.mxu0 0.0
        %592 = vmatpush1.msra.mxu0 0.0
        %593 = vmatprep.subr.mxu0 0.0
        %594 = vmatpush1.msra.mxu0 0.0
        %595 = vmatprep.subr.mxu0 0.0
        %596 = vmatpush1.msra.mxu0 0.0
        %597 = vmatprep.subr.mxu0 0.0
        %598 = vmatpush1.msra.mxu0 0.0
        %599 = vmatprep.subr.mxu0 0.0
        %600 = vmatpush1.msra.mxu0 0.0
        %601 = vmatprep.subr.mxu0 0.0
        %602 = vmatpush1.msra.mxu0 0.0
        %603 = vmatprep.subr.mxu0 0.0
        %604 = vmatpush1.msra.mxu0 0.0
        %605 = vmatprep.subr.mxu0 0.0
        %606 = vmatpush1.msra.mxu0 0.0
        %607 = vmatprep.subr.mxu0 0.0
        %608 = vmatpush1.msra.mxu0 0.0
        %609 = vmatprep.subr.mxu0 0.0
        %610 = vmatpush1.msra.mxu0 0.0
        %611 = vmatprep.subr.mxu0 0.0
        %612 = vmatpush1.msra.mxu0 0.0
        %613 = vmatprep.subr.mxu0 0.0
        %614 = vmatpush1.msra.mxu0 0.0
        %615 = vmatprep.mubr.f32.mxu0 0.0
        %616 = vmatmul.mubr.f32.gmra.mrb[0].mxu0 %v442
        %v617 = vpop.f32.mrb[0].mxu0
        %v618 = vadd.f32 %v427, %v617
        %v619 = vpop.f32.mrb[0].mxu0
        %v620 = vadd.f32 %v431, %v619
        %621 = vmatprep.mubr.f32.mxu0 0.0
        %622 = vmatmul.mubr.f32.gmra.mrb[0].mxu0 %v445
        %v623 = vpop.f32.mrb[0].mxu0
        %v624 = vadd.f32 %v427, %v623
        %v625 = vpop.f32.mrb[0].mxu0
        %v626 = vadd.f32 %v431, %v625
        %627 = vmatprep.mubr.f32.mxu0 0.0
        %628 = vmatmul.mubr.f32.gmra.mrb[0].mxu0 %v448
        %v629 = vpop.f32.mrb[0].mxu0
        %v630 = vadd.f32 %v427, %v629
        %v631 = vpop.f32.mrb[0].mxu0
        %v632 = vadd.f32 %v431, %v631
        %633 = vmatprep.mubr.f32.mxu0 0.0
        %634 = vmatmul.mubr.f32.gmra.mrb[0].mxu0 %v451
        %v635 = vpop.f32.mrb[0].mxu0
        %v636 = vadd.f32 %v427, %v635
        %v637 = vpop.f32.mrb[0].mxu0
        %v638 = vadd.f32 %v431, %v637
        %639 = vdwg.mxu0
        %v640 = vld [vmem:[#allocation2] sm:$0xff]
        %v641 = vld [vmem:[#allocation3] sm:$0xff]
        %642 = vmatprep.subr.mxu0 %v345
        %643 = vmatpush1.msra.mxu0 %v344
        %644 = vmatprep.subr.mxu0 %v349
        %645 = vmatpush1.msra.mxu0 %v348
        %646 = vmatprep.subr.mxu0 %v353
        %647 = vmatpush1.msra.mxu0 %v352
        %648 = vmatprep.subr.mxu0 %v357
        %649 = vmatpush1.msra.mxu0 %v356
        %650 = vmatprep.subr.mxu0 %v361
        %651 = vmatpush1.msra.mxu0 %v360
        %652 = vmatprep.subr.mxu0 %v365
        %653 = vmatpush1.msra.mxu0 %v364
        %654 = vmatprep.subr.mxu0 %v369
        %655 = vmatpush1.msra.mxu0 %v368
        %656 = vmatprep.subr.mxu0 %v373
        %657 = vmatpush1.msra.mxu0 %v372
        %658 = vmatprep.subr.mxu0 %v377
        %659 = vmatpush1.msra.mxu0 %v376
        %660 = vmatprep.subr.mxu0 %v381
        %661 = vmatpush1.msra.mxu0 %v380
        %662 = vmatprep.subr.mxu0 %v385
        %663 = vmatpush1.msra.mxu0 %v384
        %664 = vmatprep.subr.mxu0 %v389
        %665 = vmatpush1.msra.mxu0 %v388
        %666 = vmatprep.subr.mxu0 %v393
        %667 = vmatpush1.msra.mxu0 %v392
        %668 = vmatprep.subr.mxu0 %v397
        %669 = vmatpush1.msra.mxu0 %v396
        %670 = vmatprep.subr.mxu0 %v401
        %671 = vmatpush1.msra.mxu0 %v400
        %672 = vmatprep.subr.mxu0 %v405
        %673 = vmatpush1.msra.mxu0 %v404
        %674 = vmatprep.subr.mxu0 0.0
        %675 = vmatpush1.msra.mxu0 0.0
        %676 = vmatprep.subr.mxu0 0.0
        %677 = vmatpush1.msra.mxu0 0.0
        %678 = vmatprep.subr.mxu0 0.0
        %679 = vmatpush1.msra.mxu0 0.0
        %680 = vmatprep.subr.mxu0 0.0
        %681 = vmatpush1.msra.mxu0 0.0
        %682 = vmatprep.subr.mxu0 0.0
        %683 = vmatpush1.msra.mxu0 0.0
        %684 = vmatprep.subr.mxu0 0.0
        %685 = vmatpush1.msra.mxu0 0.0
        %686 = vmatprep.subr.mxu0 0.0
        %687 = vmatpush1.msra.mxu0 0.0
        %688 = vmatprep.subr.mxu0 0.0
        %689 = vmatpush1.msra.mxu0 0.0
        %690 = vmatprep.subr.mxu0 0.0
        %691 = vmatpush1.msra.mxu0 0.0
        %692 = vmatprep.subr.mxu0 0.0
        %693 = vmatpush1.msra.mxu0 0.0
        %694 = vmatprep.subr.mxu0 0.0
        %695 = vmatpush1.msra.mxu0 0.0
        %696 = vmatprep.subr.mxu0 0.0
        %697 = vmatpush1.msra.mxu0 0.0
        %698 = vmatprep.subr.mxu0 0.0
        %699 = vmatpush1.msra.mxu0 0.0
        %700 = vmatprep.subr.mxu0 0.0
        %701 = vmatpush1.msra.mxu0 0.0
        %702 = vmatprep.subr.mxu0 0.0
        %703 = vmatpush1.msra.mxu0 0.0
        %704 = vmatprep.subr.mxu0 0.0
        %705 = vmatpush1.msra.mxu0 0.0
        %706 = vmatprep.mubr.f32.mxu0 0.0
        %707 = vmatmul.mubr.f32.gmra.mrb[0].mxu0 %v640
        %v708 = vpop.f32.mrb[0].mxu0
        %v709 = vadd.f32 0.0, %v708
        %v710 = vpop.f32.mrb[0].mxu0
        %v711 = vadd.f32 0.0, %v710
        %712 = vdwg.mxu0
        %713 = vmatprep.subr.mxu0 %v347
        %714 = vmatpush1.msra.mxu0 %v346
        %715 = vmatprep.subr.mxu0 %v351
        %716 = vmatpush1.msra.mxu0 %v350
        %717 = vmatprep.subr.mxu0 %v355
        %718 = vmatpush1.msra.mxu0 %v354
        %719 = vmatprep.subr.mxu0 %v359
        %720 = vmatpush1.msra.mxu0 %v358
        %721 = vmatprep.subr.mxu0 %v363
        %722 = vmatpush1.msra.mxu0 %v362
        %723 = vmatprep.subr.mxu0 %v367
        %724 = vmatpush1.msra.mxu0 %v366
        %725 = vmatprep.subr.mxu0 %v371
        %726 = vmatpush1.msra.mxu0 %v370
        %727 = vmatprep.subr.mxu0 %v375
        %728 = vmatpush1.msra.mxu0 %v374
        %729 = vmatprep.subr.mxu0 %v379
        %730 = vmatpush1.msra.mxu0 %v378
        %731 = vmatprep.subr.mxu0 %v383
        %732 = vmatpush1.msra.mxu0 %v382
        %733 = vmatprep.subr.mxu0 %v387
        %734 = vmatpush1.msra.mxu0 %v386
        %735 = vmatprep.subr.mxu0 %v391
        %736 = vmatpush1.msra.mxu0 %v390
        %737 = vmatprep.subr.mxu0 %v395
        %738 = vmatpush1.msra.mxu0 %v394
        %739 = vmatprep.subr.mxu0 %v399
        %740 = vmatpush1.msra.mxu0 %v398
        %741 = vmatprep.subr.mxu0 %v403
        %742 = vmatpush1.msra.mxu0 %v402
        %743 = vmatprep.subr.mxu0 %v407
        %744 = vmatpush1.msra.mxu0 %v406
        %745 = vmatprep.subr.mxu0 0.0
        %746 = vmatpush1.msra.mxu0 0.0
        %747 = vmatprep.subr.mxu0 0.0
        %748 = vmatpush1.msra.mxu0 0.0
        %749 = vmatprep.subr.mxu0 0.0
        %750 = vmatpush1.msra.mxu0 0.0
        %751 = vmatprep.subr.mxu0 0.0
        %752 = vmatpush1.msra.mxu0 0.0
        %753 = vmatprep.subr.mxu0 0.0
        %754 = vmatpush1.msra.mxu0 0.0
        %755 = vmatprep.subr.mxu0 0.0
        %756 = vmatpush1.msra.mxu0 0.0
        %757 = vmatprep.subr.mxu0 0.0
        %758 = vmatpush1.msra.mxu0 0.0
        %759 = vmatprep.subr.mxu0 0.0
        %760 = vmatpush1.msra.mxu0 0.0
        %761 = vmatprep.subr.mxu0 0.0
        %762 = vmatpush1.msra.mxu0 0.0
        %763 = vmatprep.subr.mxu0 0.0
        %764 = vmatpush1.msra.mxu0 0.0
        %765 = vmatprep.subr.mxu0 0.0
        %766 = vmatpush1.msra.mxu0 0.0
        %767 = vmatprep.subr.mxu0 0.0
        %768 = vmatpush1.msra.mxu0 0.0
        %769 = vmatprep.subr.mxu0 0.0
        %770 = vmatpush1.msra.mxu0 0.0
        %771 = vmatprep.subr.mxu0 0.0
        %772 = vmatpush1.msra.mxu0 0.0
        %773 = vmatprep.subr.mxu0 0.0
        %774 = vmatpush1.msra.mxu0 0.0
        %775 = vmatprep.subr.mxu0 0.0
        %776 = vmatpush1.msra.mxu0 0.0
        %777 = vmatprep.mubr.f32.mxu0 0.0
        %778 = vmatmul.mubr.f32.gmra.mrb[0].mxu0 %v640
        %v779 = vpop.f32.mrb[0].mxu0
        %v780 = vadd.f32 0.0, %v779
        %v781 = vpop.f32.mrb[0].mxu0
        %v782 = vadd.f32 0.0, %v781
        %783 = vdwg.mxu0
        %v784 = vadd.f32 %v529, %v709
        %v785 = vadd.f32 %v531, %v711
        %v786 = vadd.f32 %v618, %v780
        %v787 = vadd.f32 %v620, %v782
        %v788 = vxor.u32 %v784, 2147483648
        %v789 = vmul.f32 %v788, 1.442695
        %v790 = vpow.pop %v789
        %v791 = vadd.f32 %v790, 1.0
        %v792 = vrcp.pop %v791
        %v793 = vmul.f32 1.0, %v792
        %v794 = vxor.u32 %v785, 2147483648
        %v795 = vmul.f32 %v794, 1.442695
        %v796 = vpow.pop %v795
        %v797 = vadd.f32 %v796, 1.0
        %v798 = vrcp.pop %v797
        %v799 = vmul.f32 1.0, %v798
        %v800 = vtanh.pop %v786
        %v801 = vxor.u32 %v787, 2147483648
        %v802 = vmul.f32 %v801, 1.442695
        %v803 = vpow.pop %v802
        %v804 = vadd.f32 %v803, 1.0
        %v805 = vrcp.pop %v804
        %v806 = vmul.f32 1.0, %v805
        %v807 = vmul.f32 %v799, %v641
        %v808 = vmul.f32 %v793, %v800
        %v809 = vadd.f32 %v807, %v808
        %v810 = vtanh.pop %v809
        %v811 = vmul.f32 %v806, %v810
        %812 = vmatprep.subr.mxu0 %v345
        %813 = vmatpush1.msra.mxu0 %v344
        %814 = vmatprep.subr.mxu0 %v349
        %815 = vmatpush1.msra.mxu0 %v348
        %816 = vmatprep.subr.mxu0 %v353
        %817 = vmatpush1.msra.mxu0 %v352
        %818 = vmatprep.subr.mxu0 %v357
        %819 = vmatpush1.msra.mxu0 %v356
        %820 = vmatprep.subr.mxu0 %v361
        %821 = vmatpush1.msra.mxu0 %v360
        %822 = vmatprep.subr.mxu0 %v365
        %823 = vmatpush1.msra.mxu0 %v364
        %824 = vmatprep.subr.mxu0 %v369
        %825 = vmatpush1.msra.mxu0 %v368
        %826 = vmatprep.subr.mxu0 %v373
        %827 = vmatpush1.msra.mxu0 %v372
        %828 = vmatprep.subr.mxu0 %v377
        %829 = vmatpush1.msra.mxu0 %v376
        %830 = vmatprep.subr.mxu0 %v381
        %831 = vmatpush1.msra.mxu0 %v380
        %832 = vmatprep.subr.mxu0 %v385
        %833 = vmatpush1.msra.mxu0 %v384
        %834 = vmatprep.subr.mxu0 %v389
        %835 = vmatpush1.msra.mxu0 %v388
        %836 = vmatprep.subr.mxu0 %v393
        %837 = vmatpush1.msra.mxu0 %v392
        %838 = vmatprep.subr.mxu0 %v397
        %839 = vmatpush1.msra.mxu0 %v396
        %840 = vmatprep.subr.mxu0 %v401
        %841 = vmatpush1.msra.mxu0 %v400
        %842 = vmatprep.subr.mxu0 %v405
        %843 = vmatpush1.msra.mxu0 %v404
        %844 = vmatprep.subr.mxu0 0.0
        %845 = vmatpush1.msra.mxu0 0.0
        %846 = vmatprep.subr.mxu0 0.0
        %847 = vmatpush1.msra.mxu0 0.0
        %848 = vmatprep.subr.mxu0 0.0
        %849 = vmatpush1.msra.mxu0 0.0
        %850 = vmatprep.subr.mxu0 0.0
        %851 = vmatpush1.msra.mxu0 0.0
        %852 = vmatprep.subr.mxu0 0.0
        %853 = vmatpush1.msra.mxu0 0.0
        %854 = vmatprep.subr.mxu0 0.0
        %855 = vmatpush1.msra.mxu0 0.0
        %856 = vmatprep.subr.mxu0 0.0
        %857 = vmatpush1.msra.mxu0 0.0
        %858 = vmatprep.subr.mxu0 0.0
        %859 = vmatpush1.msra.mxu0 0.0
        %860 = vmatprep.subr.mxu0 0.0
        %861 = vmatpush1.msra.mxu0 0.0
        %862 = vmatprep.subr.mxu0 0.0
        %863 = vmatpush1.msra.mxu0 0.0
        %864 = vmatprep.subr.mxu0 0.0
        %865 = vmatpush1.msra.mxu0 0.0
        %866 = vmatprep.subr.mxu0 0.0
        %867 = vmatpush1.msra.mxu0 0.0
        %868 = vmatprep.subr.mxu0 0.0
        %869 = vmatpush1.msra.mxu0 0.0
        %870 = vmatprep.subr.mxu0 0.0
        %871 = vmatpush1.msra.mxu0 0.0
        %872 = vmatprep.subr.mxu0 0.0
        %873 = vmatpush1.msra.mxu0 0.0
        %874 = vmatprep.subr.mxu0 0.0
        %875 = vmatpush1.msra.mxu0 0.0
        %876 = vmatprep.mubr.f32.mxu0 0.0
        %877 = vmatmul.mubr.f32.gmra.mrb[0].mxu0 %v811
        %v878 = vpop.f32.mrb[0].mxu0
        %v879 = vadd.f32 0.0, %v878
        %v880 = vpop.f32.mrb[0].mxu0
        %v881 = vadd.f32 0.0, %v880
        %882 = vdwg.mxu0
        %883 = vmatprep.subr.mxu0 %v347
        %884 = vmatpush1.msra.mxu0 %v346
        %885 = vmatprep.subr.mxu0 %v351
        %886 = vmatpush1.msra.mxu0 %v350
        %887 = vmatprep.subr.mxu0 %v355
        %888 = vmatpush1.msra.mxu0 %v354
        %889 = vmatprep.subr.mxu0 %v359
        %890 = vmatpush1.msra.mxu0 %v358
        %891 = vmatprep.subr.mxu0 %v363
        %892 = vmatpush1.msra.mxu0 %v362
        %893 = vmatprep.subr.mxu0 %v367
        %894 = vmatpush1.msra.mxu0 %v366
        %895 = vmatprep.subr.mxu0 %v371
        %896 = vmatpush1.msra.mxu0 %v370
        %897 = vmatprep.subr.mxu0 %v375
        %898 = vmatpush1.msra.mxu0 %v374
        %899 = vmatprep.subr.mxu0 %v379
        %900 = vmatpush1.msra.mxu0 %v378
        %901 = vmatprep.subr.mxu0 %v383
        %902 = vmatpush1.msra.mxu0 %v382
        %903 = vmatprep.subr.mxu0 %v387
        %904 = vmatpush1.msra.mxu0 %v386
        %905 = vmatprep.subr.mxu0 %v391
        %906 = vmatpush1.msra.mxu0 %v390
        %907 = vmatprep.subr.mxu0 %v395
        %908 = vmatpush1.msra.mxu0 %v394
        %909 = vmatprep.subr.mxu0 %v399
        %910 = vmatpush1.msra.mxu0 %v398
        %911 = vmatprep.subr.mxu0 %v403
        %912 = vmatpush1.msra.mxu0 %v402
        %913 = vmatprep.subr.mxu0 %v407
        %914 = vmatpush1.msra.mxu0 %v406
        %915 = vmatprep.subr.mxu0 0.0
        %916 = vmatpush1.msra.mxu0 0.0
        %917 = vmatprep.subr.mxu0 0.0
        %918 = vmatpush1.msra.mxu0 0.0
        %919 = vmatprep.subr.mxu0 0.0
        %920 = vmatpush1.msra.mxu0 0.0
        %921 = vmatprep.subr.mxu0 0.0
        %922 = vmatpush1.msra.mxu0 0.0
        %923 = vmatprep.subr.mxu0 0.0
        %924 = vmatpush1.msra.mxu0 0.0
        %925 = vmatprep.subr.mxu0 0.0
        %926 = vmatpush1.msra.mxu0 0.0
        %927 = vmatprep.subr.mxu0 0.0
        %928 = vmatpush1.msra.mxu0 0.0
        %929 = vmatprep.subr.mxu0 0.0
        %930 = vmatpush1.msra.mxu0 0.0
        %931 = vmatprep.subr.mxu0 0.0
        %932 = vmatpush1.msra.mxu0 0.0
        %933 = vmatprep.subr.mxu0 0.0
        %934 = vmatpush1.msra.mxu0 0.0
        %935 = vmatprep.subr.mxu0 0.0
        %936 = vmatpush1.msra.mxu0 0.0
        %937 = vmatprep.subr.mxu0 0.0
        %938 = vmatpush1.msra.mxu0 0.0
        %939 = vmatprep.subr.mxu0 0.0
        %940 = vmatpush1.msra.mxu0 0.0
        %941 = vmatprep.subr.mxu0 0.0
        %942 = vmatpush1.msra.mxu0 0.0
        %943 = vmatprep.subr.mxu0 0.0
        %944 = vmatpush1.msra.mxu0 0.0
        %945 = vmatprep.subr.mxu0 0.0
        %946 = vmatpush1.msra.mxu0 0.0
        %947 = vmatprep.mubr.f32.mxu0 0.0
        %948 = vmatmul.mubr.f32.gmra.mrb[0].mxu0 %v811
        %v949 = vpop.f32.mrb[0].mxu0
        %v950 = vadd.f32 0.0, %v949
        %v951 = vpop.f32.mrb[0].mxu0
        %v952 = vadd.f32 0.0, %v951
        %953 = vdwg.mxu0
        %v954 = vadd.f32 %v535, %v879
        %v955 = vadd.f32 %v537, %v881
        %v956 = vadd.f32 %v624, %v950
        %v957 = vadd.f32 %v626, %v952
        %v958 = vxor.u32 %v954, 2147483648
        %v959 = vmul.f32 %v958, 1.442695
        %v960 = vpow.pop %v959
        %v961 = vadd.f32 %v960, 1.0
        %v962 = vrcp.pop %v961
        %v963 = vmul.f32 1.0, %v962
        %v964 = vxor.u32 %v955, 2147483648
        %v965 = vmul.f32 %v964, 1.442695
        %v966 = vpow.pop %v965
        %v967 = vadd.f32 %v966, 1.0
        %v968 = vrcp.pop %v967
        %v969 = vmul.f32 1.0, %v968
        %v970 = vtanh.pop %v956
        %v971 = vxor.u32 %v957, 2147483648
        %v972 = vmul.f32 %v971, 1.442695
        %v973 = vpow.pop %v972
        %v974 = vadd.f32 %v973, 1.0
        %v975 = vrcp.pop %v974
        %v976 = vmul.f32 1.0, %v975
        %v977 = vmul.f32 %v969, %v809
        %v978 = vmul.f32 %v963, %v970
        %v979 = vadd.f32 %v977, %v978
        %v980 = vtanh.pop %v979
        %v981 = vmul.f32 %v976, %v980
        %982 = vmatprep.subr.mxu0 %v345
        %983 = vmatpush1.msra.mxu0 %v344
        %984 = vmatprep.subr.mxu0 %v349
        %985 = vmatpush1.msra.mxu0 %v348
        %986 = vmatprep.subr.mxu0 %v353
        %987 = vmatpush1.msra.mxu0 %v352
        %988 = vmatprep.subr.mxu0 %v357
        %989 = vmatpush1.msra.mxu0 %v356
        %990 = vmatprep.subr.mxu0 %v361
        %991 = vmatpush1.msra.mxu0 %v360
        %992 = vmatprep.subr.mxu0 %v365
        %993 = vmatpush1.msra.mxu0 %v364
        %994 = vmatprep.subr.mxu0 %v369
        %995 = vmatpush1.msra.mxu0 %v368
        %996 = vmatprep.subr.mxu0 %v373
        %997 = vmatpush1.msra.mxu0 %v372
        %998 = vmatprep.subr.mxu0 %v377
        %999 = vmatpush1.msra.mxu0 %v376
        %1000 = vmatprep.subr.mxu0 %v381
        %1001 = vmatpush1.msra.mxu0 %v380
        %1002 = vmatprep.subr.mxu0 %v385
        %1003 = vmatpush1.msra.mxu0 %v384
        %1004 = vmatprep.subr.mxu0 %v389
        %1005 = vmatpush1.msra.mxu0 %v388
        %1006 = vmatprep.subr.mxu0 %v393
        %1007 = vmatpush1.msra.mxu0 %v392
        %1008 = vmatprep.subr.mxu0 %v397
        %1009 = vmatpush1.msra.mxu0 %v396
        %1010 = vmatprep.subr.mxu0 %v401
        %1011 = vmatpush1.msra.mxu0 %v400
        %1012 = vmatprep.subr.mxu0 %v405
        %1013 = vmatpush1.msra.mxu0 %v404
        %1014 = vmatprep.subr.mxu0 0.0
        %1015 = vmatpush1.msra.mxu0 0.0
        %1016 = vmatprep.subr.mxu0 0.0
        %1017 = vmatpush1.msra.mxu0 0.0
        %1018 = vmatprep.subr.mxu0 0.0
        %1019 = vmatpush1.msra.mxu0 0.0
        %1020 = vmatprep.subr.mxu0 0.0
        %1021 = vmatpush1.msra.mxu0 0.0
        %1022 = vmatprep.subr.mxu0 0.0
        %1023 = vmatpush1.msra.mxu0 0.0
        %1024 = vmatprep.subr.mxu0 0.0
        %1025 = vmatpush1.msra.mxu0 0.0
        %1026 = vmatprep.subr.mxu0 0.0
        %1027 = vmatpush1.msra.mxu0 0.0
        %1028 = vmatprep.subr.mxu0 0.0
        %1029 = vmatpush1.msra.mxu0 0.0
        %1030 = vmatprep.subr.mxu0 0.0
        %1031 = vmatpush1.msra.mxu0 0.0
        %1032 = vmatprep.subr.mxu0 0.0
        %1033 = vmatpush1.msra.mxu0 0.0
        %1034 = vmatprep.subr.mxu0 0.0
        %1035 = vmatpush1.msra.mxu0 0.0
        %1036 = vmatprep.subr.mxu0 0.0
        %1037 = vmatpush1.msra.mxu0 0.0
        %1038 = vmatprep.subr.mxu0 0.0
        %1039 = vmatpush1.msra.mxu0 0.0
        %1040 = vmatprep.subr.mxu0 0.0
        %1041 = vmatpush1.msra.mxu0 0.0
        %1042 = vmatprep.subr.mxu0 0.0
        %1043 = vmatpush1.msra.mxu0 0.0
        %1044 = vmatprep.subr.mxu0 0.0
        %1045 = vmatpush1.msra.mxu0 0.0
        %1046 = vmatprep.mubr.f32.mxu0 0.0
        %1047 = vmatmul.mubr.f32.gmra.mrb[0].mxu0 %v981
        %v1048 = vpop.f32.mrb[0].mxu0
        %v1049 = vadd.f32 0.0, %v1048
        %v1050 = vpop.f32.mrb[0].mxu0
        %v1051 = vadd.f32 0.0, %v1050
        %1052 = vdwg.mxu0
        %1053 = vmatprep.subr.mxu0 %v347
        %1054 = vmatpush1.msra.mxu0 %v346
        %1055 = vmatprep.subr.mxu0 %v351
        %1056 = vmatpush1.msra.mxu0 %v350
        %1057 = vmatprep.subr.mxu0 %v355
        %1058 = vmatpush1.msra.mxu0 %v354
        %1059 = vmatprep.subr.mxu0 %v359
        %1060 = vmatpush1.msra.mxu0 %v358
        %1061 = vmatprep.subr.mxu0 %v363
        %1062 = vmatpush1.msra.mxu0 %v362
        %1063 = vmatprep.subr.mxu0 %v367
        %1064 = vmatpush1.msra.mxu0 %v366
        %1065 = vmatprep.subr.mxu0 %v371
        %1066 = vmatpush1.msra.mxu0 %v370
        %1067 = vmatprep.subr.mxu0 %v375
        %1068 = vmatpush1.msra.mxu0 %v374
        %1069 = vmatprep.subr.mxu0 %v379
        %1070 = vmatpush1.msra.mxu0 %v378
        %1071 = vmatprep.subr.mxu0 %v383
        %1072 = vmatpush1.msra.mxu0 %v382
        %1073 = vmatprep.subr.mxu0 %v387
        %1074 = vmatpush1.msra.mxu0 %v386
        %1075 = vmatprep.subr.mxu0 %v391
        %1076 = vmatpush1.msra.mxu0 %v390
        %1077 = vmatprep.subr.mxu0 %v395
        %1078 = vmatpush1.msra.mxu0 %v394
        %1079 = vmatprep.subr.mxu0 %v399
        %1080 = vmatpush1.msra.mxu0 %v398
        %1081 = vmatprep.subr.mxu0 %v403
        %1082 = vmatpush1.msra.mxu0 %v402
        %1083 = vmatprep.subr.mxu0 %v407
        %1084 = vmatpush1.msra.mxu0 %v406
        %1085 = vmatprep.subr.mxu0 0.0
        %1086 = vmatpush1.msra.mxu0 0.0
        %1087 = vmatprep.subr.mxu0 0.0
        %1088 = vmatpush1.msra.mxu0 0.0
        %1089 = vmatprep.subr.mxu0 0.0
        %1090 = vmatpush1.msra.mxu0 0.0
        %1091 = vmatprep.subr.mxu0 0.0
        %1092 = vmatpush1.msra.mxu0 0.0
        %1093 = vmatprep.subr.mxu0 0.0
        %1094 = vmatpush1.msra.mxu0 0.0
        %1095 = vmatprep.subr.mxu0 0.0
        %1096 = vmatpush1.msra.mxu0 0.0
        %1097 = vmatprep.subr.mxu0 0.0
        %1098 = vmatpush1.msra.mxu0 0.0
        %1099 = vmatprep.subr.mxu0 0.0
        %1100 = vmatpush1.msra.mxu0 0.0
        %1101 = vmatprep.subr.mxu0 0.0
        %1102 = vmatpush1.msra.mxu0 0.0
        %1103 = vmatprep.subr.mxu0 0.0
        %1104 = vmatpush1.msra.mxu0 0.0
        %1105 = vmatprep.subr.mxu0 0.0
        %1106 = vmatpush1.msra.mxu0 0.0
        %1107 = vmatprep.subr.mxu0 0.0
        %1108 = vmatpush1.msra.mxu0 0.0
        %1109 = vmatprep.subr.mxu0 0.0
        %1110 = vmatpush1.msra.mxu0 0.0
        %1111 = vmatprep.subr.mxu0 0.0
        %1112 = vmatpush1.msra.mxu0 0.0
        %1113 = vmatprep.subr.mxu0 0.0
        %1114 = vmatpush1.msra.mxu0 0.0
        %1115 = vmatprep.subr.mxu0 0.0
        %1116 = vmatpush1.msra.mxu0 0.0
        %1117 = vmatprep.mubr.f32.mxu0 0.0
        %1118 = vmatmul.mubr.f32.gmra.mrb[0].mxu0 %v981
        %v1119 = vpop.f32.mrb[0].mxu0
        %v1120 = vadd.f32 0.0, %v1119
        %v1121 = vpop.f32.mrb[0].mxu0
        %v1122 = vadd.f32 0.0, %v1121
        %1123 = vdwg.mxu0
        %v1124 = vadd.f32 %v541, %v1049
        %v1125 = vadd.f32 %v543, %v1051
        %v1126 = vadd.f32 %v630, %v1120
        %v1127 = vadd.f32 %v632, %v1122
        %v1128 = vxor.u32 %v1124, 2147483648
        %v1129 = vmul.f32 %v1128, 1.442695
        %v1130 = vpow.pop %v1129
        %v1131 = vadd.f32 %v1130, 1.0
        %v1132 = vrcp.pop %v1131
        %v1133 = vmul.f32 1.0, %v1132
        %v1134 = vxor.u32 %v1125, 2147483648
        %v1135 = vmul.f32 %v1134, 1.442695
        %v1136 = vpow.pop %v1135
        %v1137 = vadd.f32 %v1136, 1.0
        %v1138 = vrcp.pop %v1137
        %v1139 = vmul.f32 1.0, %v1138
        %v1140 = vtanh.pop %v1126
        %v1141 = vxor.u32 %v1127, 2147483648
        %v1142 = vmul.f32 %v1141, 1.442695
        %v1143 = vpow.pop %v1142
        %v1144 = vadd.f32 %v1143, 1.0
        %v1145 = vrcp.pop %v1144
        %v1146 = vmul.f32 1.0, %v1145
        %v1147 = vmul.f32 %v1139, %v979
        %v1148 = vmul.f32 %v1133, %v1140
        %v1149 = vadd.f32 %v1147, %v1148
        %v1150 = vtanh.pop %v1149
        %v1151 = vmul.f32 %v1146, %v1150
        %1152 = vmatprep.subr.mxu0 %v345
        %1153 = vmatpush1.msra.mxu0 %v344
        %1154 = vmatprep.subr.mxu0 %v349
        %1155 = vmatpush1.msra.mxu0 %v348
        %1156 = vmatprep.subr.mxu0 %v353
        %1157 = vmatpush1.msra.mxu0 %v352
        %1158 = vmatprep.subr.mxu0 %v357
        %1159 = vmatpush1.msra.mxu0 %v356
        %1160 = vmatprep.subr.mxu0 %v361
        %1161 = vmatpush1.msra.mxu0 %v360
        %1162 = vmatprep.subr.mxu0 %v365
        %1163 = vmatpush1.msra.mxu0 %v364
        %1164 = vmatprep.subr.mxu0 %v369
        %1165 = vmatpush1.msra.mxu0 %v368
        %1166 = vmatprep.subr.mxu0 %v373
        %1167 = vmatpush1.msra.mxu0 %v372
        %1168 = vmatprep.subr.mxu0 %v377
        %1169 = vmatpush1.msra.mxu0 %v376
        %1170 = vmatprep.subr.mxu0 %v381
        %1171 = vmatpush1.msra.mxu0 %v380
        %1172 = vmatprep.subr.mxu0 %v385
        %1173 = vmatpush1.msra.mxu0 %v384
        %1174 = vmatprep.subr.mxu0 %v389
        %1175 = vmatpush1.msra.mxu0 %v388
        %1176 = vmatprep.subr.mxu0 %v393
        %1177 = vmatpush1.msra.mxu0 %v392
        %1178 = vmatprep.subr.mxu0 %v397
        %1179 = vmatpush1.msra.mxu0 %v396
        %1180 = vmatprep.subr.mxu0 %v401
        %1181 = vmatpush1.msra.mxu0 %v400
        %1182 = vmatprep.subr.mxu0 %v405
        %1183 = vmatpush1.msra.mxu0 %v404
        %1184 = vmatprep.subr.mxu0 0.0
        %1185 = vmatpush1.msra.mxu0 0.0
        %1186 = vmatprep.subr.mxu0 0.0
        %1187 = vmatpush1.msra.mxu0 0.0
        %1188 = vmatprep.subr.mxu0 0.0
        %1189 = vmatpush1.msra.mxu0 0.0
        %1190 = vmatprep.subr.mxu0 0.0
        %1191 = vmatpush1.msra.mxu0 0.0
        %1192 = vmatprep.subr.mxu0 0.0
        %1193 = vmatpush1.msra.mxu0 0.0
        %1194 = vmatprep.subr.mxu0 0.0
        %1195 = vmatpush1.msra.mxu0 0.0
        %1196 = vmatprep.subr.mxu0 0.0
        %1197 = vmatpush1.msra.mxu0 0.0
        %1198 = vmatprep.subr.mxu0 0.0
        %1199 = vmatpush1.msra.mxu0 0.0
        %1200 = vmatprep.subr.mxu0 0.0
        %1201 = vmatpush1.msra.mxu0 0.0
        %1202 = vmatprep.subr.mxu0 0.0
        %1203 = vmatpush1.msra.mxu0 0.0
        %1204 = vmatprep.subr.mxu0 0.0
        %1205 = vmatpush1.msra.mxu0 0.0
        %1206 = vmatprep.subr.mxu0 0.0
        %1207 = vmatpush1.msra.mxu0 0.0
        %1208 = vmatprep.subr.mxu0 0.0
        %1209 = vmatpush1.msra.mxu0 0.0
        %1210 = vmatprep.subr.mxu0 0.0
        %1211 = vmatpush1.msra.mxu0 0.0
        %1212 = vmatprep.subr.mxu0 0.0
        %1213 = vmatpush1.msra.mxu0 0.0
        %1214 = vmatprep.subr.mxu0 0.0
        %1215 = vmatpush1.msra.mxu0 0.0
        %1216 = vmatprep.mubr.f32.mxu0 0.0
        %1217 = vmatmul.mubr.f32.gmra.mrb[0].mxu0 %v1151
        %v1218 = vpop.f32.mrb[0].mxu0
        %v1219 = vadd.f32 0.0, %v1218
        %v1220 = vpop.f32.mrb[0].mxu0
        %v1221 = vadd.f32 0.0, %v1220
        %1222 = vdwg.mxu0
        %1223 = vmatprep.subr.mxu0 %v347
        %1224 = vmatpush1.msra.mxu0 %v346
        %1225 = vmatprep.subr.mxu0 %v351
        %1226 = vmatpush1.msra.mxu0 %v350
        %1227 = vmatprep.subr.mxu0 %v355
        %1228 = vmatpush1.msra.mxu0 %v354
        %1229 = vmatprep.subr.mxu0 %v359
        %1230 = vmatpush1.msra.mxu0 %v358
        %1231 = vmatprep.subr.mxu0 %v363
        %1232 = vmatpush1.msra.mxu0 %v362
        %1233 = vmatprep.subr.mxu0 %v367
        %1234 = vmatpush1.msra.mxu0 %v366
        %1235 = vmatprep.subr.mxu0 %v371
        %1236 = vmatpush1.msra.mxu0 %v370
        %1237 = vmatprep.subr.mxu0 %v375
        %1238 = vmatpush1.msra.mxu0 %v374
        %1239 = vmatprep.subr.mxu0 %v379
        %1240 = vmatpush1.msra.mxu0 %v378
        %1241 = vmatprep.subr.mxu0 %v383
        %1242 = vmatpush1.msra.mxu0 %v382
        %1243 = vmatprep.subr.mxu0 %v387
        %1244 = vmatpush1.msra.mxu0 %v386
        %1245 = vmatprep.subr.mxu0 %v391
        %1246 = vmatpush1.msra.mxu0 %v390
        %1247 = vmatprep.subr.mxu0 %v395
        %1248 = vmatpush1.msra.mxu0 %v394
        %1249 = vmatprep.subr.mxu0 %v399
        %1250 = vmatpush1.msra.mxu0 %v398
        %1251 = vmatprep.subr.mxu0 %v403
        %1252 = vmatpush1.msra.mxu0 %v402
        %1253 = vmatprep.subr.mxu0 %v407
        %1254 = vmatpush1.msra.mxu0 %v406
        %1255 = vmatprep.subr.mxu0 0.0
        %1256 = vmatpush1.msra.mxu0 0.0
        %1257 = vmatprep.subr.mxu0 0.0
        %1258 = vmatpush1.msra.mxu0 0.0
        %1259 = vmatprep.subr.mxu0 0.0
        %1260 = vmatpush1.msra.mxu0 0.0
        %1261 = vmatprep.subr.mxu0 0.0
        %1262 = vmatpush1.msra.mxu0 0.0
        %1263 = vmatprep.subr.mxu0 0.0
        %1264 = vmatpush1.msra.mxu0 0.0
        %1265 = vmatprep.subr.mxu0 0.0
        %1266 = vmatpush1.msra.mxu0 0.0
        %1267 = vmatprep.subr.mxu0 0.0
        %1268 = vmatpush1.msra.mxu0 0.0
        %1269 = vmatprep.subr.mxu0 0.0
        %1270 = vmatpush1.msra.mxu0 0.0
        %1271 = vmatprep.subr.mxu0 0.0
        %1272 = vmatpush1.msra.mxu0 0.0
        %1273 = vmatprep.subr.mxu0 0.0
        %1274 = vmatpush1.msra.mxu0 0.0
        %1275 = vmatprep.subr.mxu0 0.0
        %1276 = vmatpush1.msra.mxu0 0.0
        %1277 = vmatprep.subr.mxu0 0.0
        %1278 = vmatpush1.msra.mxu0 0.0
        %1279 = vmatprep.subr.mxu0 0.0
        %1280 = vmatpush1.msra.mxu0 0.0
        %1281 = vmatprep.subr.mxu0 0.0
        %1282 = vmatpush1.msra.mxu0 0.0
        %1283 = vmatprep.subr.mxu0 0.0
        %1284 = vmatpush1.msra.mxu0 0.0
        %1285 = vmatprep.subr.mxu0 0.0
        %1286 = vmatpush1.msra.mxu0 0.0
        %1287 = vmatprep.mubr.f32.mxu0 0.0
        %1288 = vmatmul.mubr.f32.gmra.mrb[0].mxu0 %v1151
        %v1289 = vpop.f32.mrb[0].mxu0
        %v1290 = vadd.f32 0.0, %v1289
        %v1291 = vpop.f32.mrb[0].mxu0
        %v1292 = vadd.f32 0.0, %v1291
        %1293 = vdwg.mxu0
        %v1294 = vadd.f32 %v547, %v1219
        %v1295 = vadd.f32 %v549, %v1221
        %v1296 = vadd.f32 %v636, %v1290
        %v1297 = vadd.f32 %v638, %v1292
        %v1298 = vxor.u32 %v1294, 2147483648
        %v1299 = vmul.f32 %v1298, 1.442695
        %v1300 = vpow.pop %v1299
        %v1301 = vadd.f32 %v1300, 1.0
        %v1302 = vrcp.pop %v1301
        %v1303 = vmul.f32 1.0, %v1302
        %v1304 = vxor.u32 %v1295, 2147483648
        %v1305 = vmul.f32 %v1304, 1.442695
        %v1306 = vpow.pop %v1305
        %v1307 = vadd.f32 %v1306, 1.0
        %v1308 = vrcp.pop %v1307
        %v1309 = vmul.f32 1.0, %v1308
        %v1310 = vtanh.pop %v1296
        %v1311 = vxor.u32 %v1297, 2147483648
        %v1312 = vmul.f32 %v1311, 1.442695
        %v1313 = vpow.pop %v1312
        %v1314 = vadd.f32 %v1313, 1.0
        %v1315 = vrcp.pop %v1314
        %v1316 = vmul.f32 1.0, %v1315
        %v1317 = vmul.f32 %v1309, %v1149
        %v1318 = vmul.f32 %v1303, %v1310
        %v1319 = vadd.f32 %v1317, %v1318
        %v1320 = vtanh.pop %v1319
        %v1321 = vmul.f32 %v1316, %v1320
        %1322 = vst [vmem:[#allocation2] sm:$0xff] %v1321
        %1323 = vst [vmem:[#allocation3] sm:$0xff] %v1319
        %p1324 = scmp.eq.s32.totalorder %s22, 1
        // Predicated region
        $region69: #{tpu_custom_call.1} parent=51 // pred_check
          %p1325 = pneg %p1324
        $region70: #{tpu_custom_call.1} parent=51 // pred_check_branch
          %1327 = sbr.rel (%p1325) target = $region72
        $region71: #{tpu_custom_call.1} parent=51 // pred_region
          %v1328 = vmax.f32 %v1321, 0.0
          %v1329 = vld [vmem:[#allocation7] sm:$0xff]
          %v1330 = vld [vmem:[#allocation7 + $0x8] sm:$0xff]
          %v1331 = vld [vmem:[#allocation7 + $0x10] sm:$0xff]
          %v1332 = vld [vmem:[#allocation7 + $0x18] sm:$0xff]
          %v1333 = vld [vmem:[#allocation7 + $0x20] sm:$0xff]
          %v1334 = vld [vmem:[#allocation7 + $0x28] sm:$0xff]
          %v1335 = vld [vmem:[#allocation7 + $0x30] sm:$0xff]
          %v1336 = vld [vmem:[#allocation7 + $0x38] sm:$0xff]
          %v1337 = vld [vmem:[#allocation7 + $0x40] sm:$0xff]
          %v1338 = vld [vmem:[#allocation7 + $0x48] sm:$0xff]
          %v1339 = vld [vmem:[#allocation7 + $0x50] sm:$0xff]
          %v1340 = vld [vmem:[#allocation7 + $0x58] sm:$0xff]
          %v1341 = vld [vmem:[#allocation7 + $0x60] sm:$0xff]
          %v1342 = vld [vmem:[#allocation7 + $0x68] sm:$0xff]
          %v1343 = vld [vmem:[#allocation7 + $0x70] sm:$0xff]
          %v1344 = vld [vmem:[#allocation7 + $0x78] sm:$0xff]
          %v1345 = vld [vmem:[%s5] sm:$0x1]
          %v1347 = vlaneseq
          %v1348 = vshrl.u32 %v1347, 7
          %v1349 = vsub.s32 0, %v1348
          %v1350 = vrot.slane %v1345, %v1349
          %1352 = vmatprep.subr.mxu0 0.0
          %1353 = vmatpush1.msra.mxu0 %v1329
          %1354 = vmatprep.subr.mxu0 0.0
          %1355 = vmatpush1.msra.mxu0 %v1330
          %1356 = vmatprep.subr.mxu0 0.0
          %1357 = vmatpush1.msra.mxu0 %v1331
          %1358 = vmatprep.subr.mxu0 0.0
          %1359 = vmatpush1.msra.mxu0 %v1332
          %1360 = vmatprep.subr.mxu0 0.0
          %1361 = vmatpush1.msra.mxu0 %v1333
          %1362 = vmatprep.subr.mxu0 0.0
          %1363 = vmatpush1.msra.mxu0 %v1334
          %1364 = vmatprep.subr.mxu0 0.0
          %1365 = vmatpush1.msra.mxu0 %v1335
          %1366 = vmatprep.subr.mxu0 0.0
          %1367 = vmatpush1.msra.mxu0 %v1336
          %1368 = vmatprep.subr.mxu0 0.0
          %1369 = vmatpush1.msra.mxu0 %v1337
          %1370 = vmatprep.subr.mxu0 0.0
          %1371 = vmatpush1.msra.mxu0 %v1338
          %1372 = vmatprep.subr.mxu0 0.0
          %1373 = vmatpush1.msra.mxu0 %v1339
          %1374 = vmatprep.subr.mxu0 0.0
          %1375 = vmatpush1.msra.mxu0 %v1340
          %1376 = vmatprep.subr.mxu0 0.0
          %1377 = vmatpush1.msra.mxu0 %v1341
          %1378 = vmatprep.subr.mxu0 0.0
          %1379 = vmatpush1.msra.mxu0 %v1342
          %1380 = vmatprep.subr.mxu0 0.0
          %1381 = vmatpush1.msra.mxu0 %v1343
          %1382 = vmatprep.subr.mxu0 0.0
          %1383 = vmatpush1.msra.mxu0 %v1344
          %1384 = vmatprep.subr.mxu0 0.0
          %1385 = vmatpush1.msra.mxu0 0.0
          %1386 = vmatprep.subr.mxu0 0.0
          %1387 = vmatpush1.msra.mxu0 0.0
          %1388 = vmatprep.subr.mxu0 0.0
          %1389 = vmatpush1.msra.mxu0 0.0
          %1390 = vmatprep.subr.mxu0 0.0
          %1391 = vmatpush1.msra.mxu0 0.0
          %1392 = vmatprep.subr.mxu0 0.0
          %1393 = vmatpush1.msra.mxu0 0.0
          %1394 = vmatprep.subr.mxu0 0.0
          %1395 = vmatpush1.msra.mxu0 0.0
          %1396 = vmatprep.subr.mxu0 0.0
          %1397 = vmatpush1.msra.mxu0 0.0
          %1398 = vmatprep.subr.mxu0 0.0
          %1399 = vmatpush1.msra.mxu0 0.0
          %1400 = vmatprep.subr.mxu0 0.0
          %1401 = vmatpush1.msra.mxu0 0.0
          %1402 = vmatprep.subr.mxu0 0.0
          %1403 = vmatpush1.msra.mxu0 0.0
          %1404 = vmatprep.subr.mxu0 0.0
          %1405 = vmatpush1.msra.mxu0 0.0
          %1406 = vmatprep.subr.mxu0 0.0
          %1407 = vmatpush1.msra.mxu0 0.0
          %1408 = vmatprep.subr.mxu0 0.0
          %1409 = vmatpush1.msra.mxu0 0.0
          %1410 = vmatprep.subr.mxu0 0.0
          %1411 = vmatpush1.msra.mxu0 0.0
          %1412 = vmatprep.subr.mxu0 0.0
          %1413 = vmatpush1.msra.mxu0 0.0
          %1414 = vmatprep.subr.mxu0 0.0
          %1415 = vmatpush1.msra.mxu0 0.0
          %1416 = vmatprep.mubr.f32.mxu0 0.0
          %1417 = vmatmul.mubr.f32.gmra.mrb[0].mxu0 %v1328
          %v1418 = vpop.f32.mrb[0].mxu0
          %v1419 = vadd.f32 %v1350, %v1418
          %v1420 = vpop.f32.mrb[0].mxu0
          %1421 = vdwg.mxu0
          %v1422 = vmax.f32 %v1419, 0.0
          %v1423 = vld [vmem:[#allocation9] sm:$0xff]
          %v1424 = vld [vmem:[#allocation9 + $0x8] sm:$0xff]
          %v1425 = vld [vmem:[#allocation9 + $0x10] sm:$0xff]
          %v1426 = vld [vmem:[#allocation9 + $0x18] sm:$0xff]
          %v1427 = vld [vmem:[#allocation9 + $0x20] sm:$0xff]
          %v1428 = vld [vmem:[#allocation9 + $0x28] sm:$0xff]
          %v1429 = vld [vmem:[#allocation9 + $0x30] sm:$0xff]
          %v1430 = vld [vmem:[#allocation9 + $0x38] sm:$0xff]
          %v1431 = vld [vmem:[#allocation9 + $0x40] sm:$0xff]
          %v1432 = vld [vmem:[#allocation9 + $0x48] sm:$0xff]
          %v1433 = vld [vmem:[#allocation9 + $0x50] sm:$0xff]
          %v1434 = vld [vmem:[#allocation9 + $0x58] sm:$0xff]
          %v1435 = vld [vmem:[#allocation9 + $0x60] sm:$0xff]
          %v1436 = vld [vmem:[#allocation9 + $0x68] sm:$0xff]
          %v1437 = vld [vmem:[#allocation9 + $0x70] sm:$0xff]
          %v1438 = vld [vmem:[#allocation9 + $0x78] sm:$0xff]
          %v1439 = vld [vmem:[%s7] sm:$0x1]
          %v1441 = vlaneseq
          %v1442 = vshrl.u32 %v1441, 7
          %v1443 = vsub.s32 0, %v1442
          %v1444 = vrot.slane %v1439, %v1443
          %1446 = vmatprep.subr.mxu0 0.0
          %1447 = vmatpush1.msra.mxu0 %v1423
          %1448 = vmatprep.subr.mxu0 0.0
          %1449 = vmatpush1.msra.mxu0 %v1424
          %1450 = vmatprep.subr.mxu0 0.0
          %1451 = vmatpush1.msra.mxu0 %v1425
          %1452 = vmatprep.subr.mxu0 0.0
          %1453 = vmatpush1.msra.mxu0 %v1426
          %1454 = vmatprep.subr.mxu0 0.0
          %1455 = vmatpush1.msra.mxu0 %v1427
          %1456 = vmatprep.subr.mxu0 0.0
          %1457 = vmatpush1.msra.mxu0 %v1428
          %1458 = vmatprep.subr.mxu0 0.0
          %1459 = vmatpush1.msra.mxu0 %v1429
          %1460 = vmatprep.subr.mxu0 0.0
          %1461 = vmatpush1.msra.mxu0 %v1430
          %1462 = vmatprep.subr.mxu0 0.0
          %1463 = vmatpush1.msra.mxu0 %v1431
          %1464 = vmatprep.subr.mxu0 0.0
          %1465 = vmatpush1.msra.mxu0 %v1432
          %1466 = vmatprep.subr.mxu0 0.0
          %1467 = vmatpush1.msra.mxu0 %v1433
          %1468 = vmatprep.subr.mxu0 0.0
          %1469 = vmatpush1.msra.mxu0 %v1434
          %1470 = vmatprep.subr.mxu0 0.0
          %1471 = vmatpush1.msra.mxu0 %v1435
          %1472 = vmatprep.subr.mxu0 0.0
          %1473 = vmatpush1.msra.mxu0 %v1436
          %1474 = vmatprep.subr.mxu0 0.0
          %1475 = vmatpush1.msra.mxu0 %v1437
          %1476 = vmatprep.subr.mxu0 0.0
          %1477 = vmatpush1.msra.mxu0 %v1438
          %1478 = vmatprep.subr.mxu0 0.0
          %1479 = vmatpush1.msra.mxu0 0.0
          %1480 = vmatprep.subr.mxu0 0.0
          %1481 = vmatpush1.msra.mxu0 0.0
          %1482 = vmatprep.subr.mxu0 0.0
          %1483 = vmatpush1.msra.mxu0 0.0
          %1484 = vmatprep.subr.mxu0 0.0
          %1485 = vmatpush1.msra.mxu0 0.0
          %1486 = vmatprep.subr.mxu0 0.0
          %1487 = vmatpush1.msra.mxu0 0.0
          %1488 = vmatprep.subr.mxu0 0.0
          %1489 = vmatpush1.msra.mxu0 0.0
          %1490 = vmatprep.subr.mxu0 0.0
          %1491 = vmatpush1.msra.mxu0 0.0
          %1492 = vmatprep.subr.mxu0 0.0
          %1493 = vmatpush1.msra.mxu0 0.0
          %1494 = vmatprep.subr.mxu0 0.0
          %1495 = vmatpush1.msra.mxu0 0.0
          %1496 = vmatprep.subr.mxu0 0.0
          %1497 = vmatpush1.msra.mxu0 0.0
          %1498 = vmatprep.subr.mxu0 0.0
          %1499 = vmatpush1.msra.mxu0 0.0
          %1500 = vmatprep.subr.mxu0 0.0
          %1501 = vmatpush1.msra.mxu0 0.0
          %1502 = vmatprep.subr.mxu0 0.0
          %1503 = vmatpush1.msra.mxu0 0.0
          %1504 = vmatprep.subr.mxu0 0.0
          %1505 = vmatpush1.msra.mxu0 0.0
          %1506 = vmatprep.subr.mxu0 0.0
          %1507 = vmatpush1.msra.mxu0 0.0
          %1508 = vmatprep.subr.mxu0 0.0
          %1509 = vmatpush1.msra.mxu0 0.0
          %1510 = vmatprep.mubr.f32.mxu0 0.0
          %1511 = vmatmul.mubr.f32.gmra.mrb[0].mxu0 %v1422
          %v1512 = vpop.f32.mrb[0].mxu0
          %v1513 = vadd.f32 %v1444, %v1512
          %v1514 = vpop.f32.mrb[0].mxu0
          %1515 = vdwg.mxu0
          %1516 = vst [vmem:[#allocation10] sm:$0xff] %v1513
        $region72: #{tpu_custom_call.1} parent=51 // pred_fallthru
          _
        // Predicated region
        $region73: #{tpu_custom_call.1} parent=51 // pred_check
          %p1517 = pneg %p208
        $region74: #{tpu_custom_call.1} parent=51 // pred_check_branch
          %1519 = sbr.rel (%p1517) target = $region76
        $region75: #{tpu_custom_call.1} parent=51 // pred_region
          %s1521 = ssub.s32 128, 128
          %1522 = vsyncadd [#allocation6], %s1521
          %s1524 = sshll.u32 [#allocation10], 4
          %s1525 = int_to_ptr.vmem [resolvable:$true] %s1524
          %1527 = dma.vmem_to_hbm [thread:$0]  %s1525, 128, %s8, [#allocation6]
        $region76: #{tpu_custom_call.1} parent=51 // pred_fallthru
          _
        // Predicated region
        $region77: #{tpu_custom_call.1} parent=51 // pred_check
          %p1528 = pneg %p208
        $region78: #{tpu_custom_call.1} parent=51 // pred_check_branch
          %1530 = sbr.rel (%p1528) target = $region80
        $region79: #{tpu_custom_call.1} parent=51 // pred_region
          %1531 = dma.done [#allocation6], 128
        $region80: #{tpu_custom_call.1} parent=51 // pred_fallthru
          _
      $region52: #{tpu_custom_call.1} parent=5 // pred_fallthru
        _
      %p1532 = scmp.le.s32.totalorder 2, %s17
      // Predicated region
      $region81: #{tpu_custom_call.1} parent=5 // pred_check
        %p1533 = pneg %p1532
      $region82: #{tpu_custom_call.1} parent=5 // pred_check_branch
        %1535 = sbr.rel (%p1533) target = $region84
      $region83: #{tpu_custom_call.1} parent=5 // pred_region
        %s1536 = ssub.s32 %s17, 2
      $region84: #{tpu_custom_call.1} parent=5 // pred_fallthru
        _
    $region6: #{tpu_custom_call.1} parent=1 // loop_footer
      %s21 = sadd.s32 1, %s17
    $region7: #{tpu_custom_call.1} parent=1 // loop_footer_branch
      %16 = sbr.rel target = $region3
    $region8: #{tpu_custom_call.1} parent=1 // loop_exit
      _
    %1537 = vsyncpa [#allocation5], 1
    %s1538 = scalar_lea.sflag [#allocation5], 1
    %1539 = vsyncpa %s1538, 1
    %1540 = vsyncpa [#allocation8], 1
    %1541 = vsyncpa [#allocation6], 1
    %s1542 = scalar_lea.sflag [#allocation6], 1
    %1543 = vsyncpa %s1542, 1

</llo_original>
